<compile_context>
chip_gen: v6e
topology: v6e:2x2x1
jax: 0.10.0
libtpu: 0.0.40
codegen_flags: <defaults>
</compile_context>

<pallas_src>
import numpy as np
import jax
import jax.numpy as jnp
from jax.experimental import pallas as pl
from jax.experimental.pallas import tpu as pltpu


# ------------------------------- Pallas kernel -------------------------------
def gru_encoder_kernel(emb_ref, pos_ref, mask_ref, wih_ref, whh_ref,
                       bih_ref, bhh_ref, out_ref, gx_ref):
    T, B, H = out_ref.shape

    # positional add + mask: pure VPU work; mask is (T*B, 1) -> cheap lane broadcast
    x = (emb_ref[...] + pos_ref[...]) * mask_ref[...]            # (T*B, D) f32

    # input projection: one 2-D MXU dot per gate -> time-major VMEM scratch (3, T*B, H)
    for g in range(3):
        gx_ref[g, :, :] = (
            jnp.dot(x, wih_ref[g], preferred_element_type=jnp.float32)
            + bih_ref[g])

    # hoist recurrent weights/biases once (gate-major, leading-axis reads)
    w_r, w_z, w_n = whh_ref[0], whh_ref[1], whh_ref[2]           # (H, H) each
    b_r, b_z, b_n = bhh_ref[0], bhh_ref[1], bhh_ref[2]           # (1, H) each

    # fully-unrolled recurrence over time (T static & small)
    h = jnp.zeros((B, H), jnp.float32)
    for t in range(T):
        gx_r = gx_ref[0, pl.ds(t * B, B)]                        # (B, H) contiguous loads
        gx_z = gx_ref[1, pl.ds(t * B, B)]
        gx_n = gx_ref[2, pl.ds(t * B, B)]
        # PyTorch GRU gate order r, z, n;  n = tanh(W_in x + b_in + r*(W_hn h + b_hn))
        r = jax.nn.sigmoid(gx_r + jnp.dot(h, w_r, preferred_element_type=jnp.float32) + b_r)
        z = jax.nn.sigmoid(gx_z + jnp.dot(h, w_z, preferred_element_type=jnp.float32) + b_z)
        n = jnp.tanh(gx_n + r * (jnp.dot(h, w_n, preferred_element_type=jnp.float32) + b_n))
        h = (1.0 - z) * n + z * h
        out_ref[t] = h                                           # leading-axis, lane-dense store


# ---------------------------------- wrapper -----------------------------------
def recurrent_encoder_forward(emb, mask, pos_enc, w_ih, w_hh, b_ih, b_hh):
    """emb (B,T,D), mask (B,T), pos_enc (1,T,D); PyTorch GRU params:
    w_ih (3H,D), w_hh (3H,H), b_ih (3H,), b_hh (3H,) with gate order r,z,n.
    Returns the full GRU output sequence (B, T, H)."""
    B, T, D = emb.shape
    H = w_hh.shape[1]

    # --- layout plumbing only (no arithmetic hoisted out of the kernel) ---
    emb_tm = jnp.transpose(emb, (1, 0, 2)).reshape(T * B, D)                    # time-major rows t*B+b
    pos_tm = jnp.broadcast_to(pos_enc.reshape(T, 1, D), (T, B, D)).reshape(T * B, D)
    mask_tm = jnp.transpose(mask, (1, 0)).reshape(T * B, 1).astype(jnp.float32)
    wih_g = jnp.transpose(w_ih.reshape(3, H, D), (0, 2, 1))                     # (3, D, H)
    whh_g = jnp.transpose(w_hh.reshape(3, H, H), (0, 2, 1))                     # (3, H, H)
    bih_g = b_ih.reshape(3, 1, H)
    bhh_g = b_hh.reshape(3, 1, H)

    out_tm = pl.pallas_call(
        gru_encoder_kernel,
        out_shape=jax.ShapeDtypeStruct((T, B, H), jnp.float32),
        in_specs=[pl.BlockSpec(memory_space=pltpu.MemorySpace.VMEM)] * 7,
        out_specs=pl.BlockSpec(memory_space=pltpu.MemorySpace.VMEM),
        scratch_shapes=[pltpu.VMEM((3, T * B, H), jnp.float32)],
    )(emb_tm, pos_tm, mask_tm, wih_g, whh_g, bih_g, bhh_g)

    return jnp.transpose(out_tm, (1, 0, 2))                                     # (B, T, H)


# ------------------------------ pure-JAX reference ----------------------------
def ref_forward(emb, mask, pos_enc, w_ih, w_hh, b_ih, b_hh):
    H = w_hh.shape[1]
    x = (emb + pos_enc) * mask[..., None]
    gx = jnp.einsum("btd,hd->bth", x, w_ih) + b_ih[None, None, :]

    def step(h, gx_t):
        gh = h @ w_hh.T + b_hh[None, :]
        r = jax.nn.sigmoid(gx_t[:, 0:H] + gh[:, 0:H])
        z = jax.nn.sigmoid(gx_t[:, H:2 * H] + gh[:, H:2 * H])
        n = jnp.tanh(gx_t[:, 2 * H:] + r * gh[:, 2 * H:])
        h_new = (1.0 - z) * n + z * h
        return h_new, h_new

    h0 = jnp.zeros((emb.shape[0], H), jnp.float32)
    _, ys = jax.lax.scan(step, h0, jnp.swapaxes(gx, 0, 1))
    return jnp.swapaxes(ys, 0, 1)


# --------------------------- positional encoding ------------------------------
def make_positional_encoding(max_len, d):
    pos = np.arange(max_len)[:, None].astype(np.float64)
    i = np.arange(d)[None, :].astype(np.float64)
    angle_rates = 1.0 / np.power(10000.0, 2.0 * (i // 2) / d)
    angle = pos * angle_rates
    angle[:, 0::2] = np.sin(angle[:, 0::2])
    angle[:, 1::2] = np.cos(angle[:, 1::2])
    return jnp.asarray(angle[None, ...], dtype=jnp.float32)      # (1, max_len, d)


# ----------------------------------- main --------------------------------------
if __name__ == "__main__":
    # module hyperparameters
    initial_embedding_size = 8     # D (GRU input size)
    embedding_size = 32            # H (GRU hidden size, unidirectional)
    max_len = 8                    # T
    batch = 2                      # B
    apply_positional_encoding = True

    D, H, T, B = initial_embedding_size, embedding_size, max_len, batch

    key = jax.random.PRNGKey(0)
    k_emb, k_mask, k1, k2, k3, k4 = jax.random.split(key, 6)

    # inputs
    embeddings = jax.random.normal(k_emb, (B, T, D), dtype=jnp.float32)
    mask = (jax.random.uniform(k_mask, (B, T)) < 0.8).astype(jnp.float32)
    pos_enc = make_positional_encoding(T, D) if apply_positional_encoding \
        else jnp.zeros((1, T, D), jnp.float32)

    # deterministic GRU parameters, PyTorch layout (gate order r, z, n)
    scale = 1.0 / np.sqrt(H)
    w_ih = jax.random.uniform(k1, (3 * H, D), minval=-scale, maxval=scale, dtype=jnp.float32)
    w_hh = jax.random.uniform(k2, (3 * H, H), minval=-scale, maxval=scale, dtype=jnp.float32)
    b_ih = jax.random.uniform(k3, (3 * H,), minval=-scale, maxval=scale, dtype=jnp.float32)
    b_hh = jax.random.uniform(k4, (3 * H,), minval=-scale, maxval=scale, dtype=jnp.float32)

    seq = jax.block_until_ready(
        recurrent_encoder_forward(embeddings, mask, pos_enc, w_ih, w_hh, b_ih, b_hh))
    seq_ref = jax.block_until_ready(
        ref_forward(embeddings, mask, pos_enc, w_ih, w_hh, b_ih, b_hh))

    max_err = float(jnp.max(jnp.abs(seq - seq_ref)))
    assert seq.shape == (B, T, H), seq.shape
    assert max_err < 1e-3, f"mismatch vs reference: {max_err}"

    print("KERNEL_OK")
</pallas_src>

<mosaic_0001>
module attributes {stable_mosaic.version = 11 : i64} {
  func.func @gru_encoder_kernel(%arg0: memref<16x8xf32, #tpu.memory_space<vmem>>, %arg1: memref<16x8xf32, #tpu.memory_space<vmem>>, %arg2: memref<16x1xf32, #tpu.memory_space<vmem>>, %arg3: memref<3x8x32xf32, #tpu.memory_space<vmem>>, %arg4: memref<3x32x32xf32, #tpu.memory_space<vmem>>, %arg5: memref<3x1x32xf32, #tpu.memory_space<vmem>>, %arg6: memref<3x1x32xf32, #tpu.memory_space<vmem>>, %arg7: memref<8x2x32xf32, #tpu.memory_space<vmem>>, %arg8: memref<3x16x32xf32, #tpu.memory_space<vmem>>) attributes {dimension_semantics = [], scalar_prefetch = 0 : i64, scratch_operands = 1 : i64, tpu.core_type = #tpu.core_type<tc>} {
    %c0 = arith.constant 0 : index
    %c0_0 = arith.constant 0 : index
    %0 = vector.load %arg0[%c0, %c0_0] : memref<16x8xf32, #tpu.memory_space<vmem>>, vector<16x8xf32>
    %c0_1 = arith.constant 0 : index
    %c0_2 = arith.constant 0 : index
    %1 = vector.load %arg1[%c0_1, %c0_2] : memref<16x8xf32, #tpu.memory_space<vmem>>, vector<16x8xf32>
    %2 = arith.addf %0, %1 : vector<16x8xf32>
    %c0_3 = arith.constant 0 : index
    %c0_4 = arith.constant 0 : index
    %3 = vector.load %arg2[%c0_3, %c0_4] : memref<16x1xf32, #tpu.memory_space<vmem>>, vector<16x1xf32>
    %4 = vector.broadcast %3 : vector<16x1xf32> to vector<16x8xf32>
    %5 = arith.mulf %2, %4 : vector<16x8xf32>
    %c0_5 = arith.constant 0 : index
    %c0_6 = arith.constant 0 : index
    %c0_7 = arith.constant 0 : index
    %6 = vector.load %arg3[%c0_5, %c0_6, %c0_7] : memref<3x8x32xf32, #tpu.memory_space<vmem>>, vector<1x8x32xf32>
    %7 = vector.shape_cast %6 : vector<1x8x32xf32> to vector<8x32xf32>
    %cst = arith.constant dense<0.000000e+00> : vector<16x32xf32>
    %8 = tpu.matmul %5, %7, %cst {dimension_numbers = #tpu.dot_dimension_numbers<[1], [0], [0], [1], [0, 0, 1, 1], [], []>} : vector<16x8xf32>, vector<8x32xf32>, vector<16x32xf32> -> vector<16x32xf32>
    %c0_8 = arith.constant 0 : index
    %c0_9 = arith.constant 0 : index
    %c0_10 = arith.constant 0 : index
    %9 = vector.load %arg5[%c0_8, %c0_9, %c0_10] : memref<3x1x32xf32, #tpu.memory_space<vmem>>, vector<1x1x32xf32>
    %10 = vector.shape_cast %9 : vector<1x1x32xf32> to vector<1x32xf32>
    %11 = vector.broadcast %10 : vector<1x32xf32> to vector<16x32xf32>
    %12 = arith.addf %8, %11 : vector<16x32xf32>
    %c0_11 = arith.constant 0 : index
    %c0_12 = arith.constant 0 : index
    %c0_13 = arith.constant 0 : index
    %13 = vector.load %arg8[%c0_11, %c0_12, %c0_13] : memref<3x16x32xf32, #tpu.memory_space<vmem>>, vector<1x16x32xf32>
    %14 = vector.shape_cast %13 : vector<1x16x32xf32> to vector<16x32xf32>
    %15 = vector.shape_cast %12 : vector<16x32xf32> to vector<1x16x32xf32>
    tpu.vector_store %arg8[%c0_11, %c0_12, %c0_13], %15 {strides = array<i32>} : memref<3x16x32xf32, #tpu.memory_space<vmem>>, vector<1x16x32xf32>,
    %c1 = arith.constant 1 : index
    %c0_14 = arith.constant 0 : index
    %c0_15 = arith.constant 0 : index
    %16 = vector.load %arg3[%c1, %c0_14, %c0_15] : memref<3x8x32xf32, #tpu.memory_space<vmem>>, vector<1x8x32xf32>
    %17 = vector.shape_cast %16 : vector<1x8x32xf32> to vector<8x32xf32>
    %cst_16 = arith.constant dense<0.000000e+00> : vector<16x32xf32>
    %18 = tpu.matmul %5, %17, %cst_16 {dimension_numbers = #tpu.dot_dimension_numbers<[1], [0], [0], [1], [0, 0, 1, 1], [], []>} : vector<16x8xf32>, vector<8x32xf32>, vector<16x32xf32> -> vector<16x32xf32>
    %c1_17 = arith.constant 1 : index
    %c0_18 = arith.constant 0 : index
    %c0_19 = arith.constant 0 : index
    %19 = vector.load %arg5[%c1_17, %c0_18, %c0_19] : memref<3x1x32xf32, #tpu.memory_space<vmem>>, vector<1x1x32xf32>
    %20 = vector.shape_cast %19 : vector<1x1x32xf32> to vector<1x32xf32>
    %21 = vector.broadcast %20 : vector<1x32xf32> to vector<16x32xf32>
    %22 = arith.addf %18, %21 : vector<16x32xf32>
    %c1_20 = arith.constant 1 : index
    %c0_21 = arith.constant 0 : index
    %c0_22 = arith.constant 0 : index
    %23 = vector.load %arg8[%c1_20, %c0_21, %c0_22] : memref<3x16x32xf32, #tpu.memory_space<vmem>>, vector<1x16x32xf32>
    %24 = vector.shape_cast %23 : vector<1x16x32xf32> to vector<16x32xf32>
    %25 = vector.shape_cast %22 : vector<16x32xf32> to vector<1x16x32xf32>
    tpu.vector_store %arg8[%c1_20, %c0_21, %c0_22], %25 {strides = array<i32>} : memref<3x16x32xf32, #tpu.memory_space<vmem>>, vector<1x16x32xf32>,
    %c2 = arith.constant 2 : index
    %c0_23 = arith.constant 0 : index
    %c0_24 = arith.constant 0 : index
    %26 = vector.load %arg3[%c2, %c0_23, %c0_24] : memref<3x8x32xf32, #tpu.memory_space<vmem>>, vector<1x8x32xf32>
    %27 = vector.shape_cast %26 : vector<1x8x32xf32> to vector<8x32xf32>
    %cst_25 = arith.constant dense<0.000000e+00> : vector<16x32xf32>
    %28 = tpu.matmul %5, %27, %cst_25 {dimension_numbers = #tpu.dot_dimension_numbers<[1], [0], [0], [1], [0, 0, 1, 1], [], []>} : vector<16x8xf32>, vector<8x32xf32>, vector<16x32xf32> -> vector<16x32xf32>
    %c2_26 = arith.constant 2 : index
    %c0_27 = arith.constant 0 : index
    %c0_28 = arith.constant 0 : index
    %29 = vector.load %arg5[%c2_26, %c0_27, %c0_28] : memref<3x1x32xf32, #tpu.memory_space<vmem>>, vector<1x1x32xf32>
    %30 = vector.shape_cast %29 : vector<1x1x32xf32> to vector<1x32xf32>
    %31 = vector.broadcast %30 : vector<1x32xf32> to vector<16x32xf32>
    %32 = arith.addf %28, %31 : vector<16x32xf32>
    %c2_29 = arith.constant 2 : index
    %c0_30 = arith.constant 0 : index
    %c0_31 = arith.constant 0 : index
    %33 = vector.load %arg8[%c2_29, %c0_30, %c0_31] : memref<3x16x32xf32, #tpu.memory_space<vmem>>, vector<1x16x32xf32>
    %34 = vector.shape_cast %33 : vector<1x16x32xf32> to vector<16x32xf32>
    %35 = vector.shape_cast %32 : vector<16x32xf32> to vector<1x16x32xf32>
    tpu.vector_store %arg8[%c2_29, %c0_30, %c0_31], %35 {strides = array<i32>} : memref<3x16x32xf32, #tpu.memory_space<vmem>>, vector<1x16x32xf32>,
    %c0_32 = arith.constant 0 : index
    %c0_33 = arith.constant 0 : index
    %c0_34 = arith.constant 0 : index
    %36 = vector.load %arg4[%c0_32, %c0_33, %c0_34] : memref<3x32x32xf32, #tpu.memory_space<vmem>>, vector<1x32x32xf32>
    %37 = vector.shape_cast %36 : vector<1x32x32xf32> to vector<32x32xf32>
    %c1_35 = arith.constant 1 : index
    %c0_36 = arith.constant 0 : index
    %c0_37 = arith.constant 0 : index
    %38 = vector.load %arg4[%c1_35, %c0_36, %c0_37] : memref<3x32x32xf32, #tpu.memory_space<vmem>>, vector<1x32x32xf32>
    %39 = vector.shape_cast %38 : vector<1x32x32xf32> to vector<32x32xf32>
    %c2_38 = arith.constant 2 : index
    %c0_39 = arith.constant 0 : index
    %c0_40 = arith.constant 0 : index
    %40 = vector.load %arg4[%c2_38, %c0_39, %c0_40] : memref<3x32x32xf32, #tpu.memory_space<vmem>>, vector<1x32x32xf32>
    %41 = vector.shape_cast %40 : vector<1x32x32xf32> to vector<32x32xf32>
    %c0_41 = arith.constant 0 : index
    %c0_42 = arith.constant 0 : index
    %c0_43 = arith.constant 0 : index
    %42 = vector.load %arg6[%c0_41, %c0_42, %c0_43] : memref<3x1x32xf32, #tpu.memory_space<vmem>>, vector<1x1x32xf32>
    %43 = vector.shape_cast %42 : vector<1x1x32xf32> to vector<1x32xf32>
    %c1_44 = arith.constant 1 : index
    %c0_45 = arith.constant 0 : index
    %c0_46 = arith.constant 0 : index
    %44 = vector.load %arg6[%c1_44, %c0_45, %c0_46] : memref<3x1x32xf32, #tpu.memory_space<vmem>>, vector<1x1x32xf32>
    %45 = vector.shape_cast %44 : vector<1x1x32xf32> to vector<1x32xf32>
    %c2_47 = arith.constant 2 : index
    %c0_48 = arith.constant 0 : index
    %c0_49 = arith.constant 0 : index
    %46 = vector.load %arg6[%c2_47, %c0_48, %c0_49] : memref<3x1x32xf32, #tpu.memory_space<vmem>>, vector<1x1x32xf32>
    %47 = vector.shape_cast %46 : vector<1x1x32xf32> to vector<1x32xf32>
    %cst_50 = arith.constant 0.000000e+00 : f32
    %48 = vector.broadcast %cst_50 : f32 to vector<2x32xf32>
    %c0_51 = arith.constant 0 : index
    %c0_52 = arith.constant 0 : index
    %c0_53 = arith.constant 0 : index
    %49 = vector.load %arg8[%c0_51, %c0_52, %c0_53] : memref<3x16x32xf32, #tpu.memory_space<vmem>>, vector<1x2x32xf32>
    %50 = vector.shape_cast %49 : vector<1x2x32xf32> to vector<2x32xf32>
    %c1_54 = arith.constant 1 : index
    %c0_55 = arith.constant 0 : index
    %c0_56 = arith.constant 0 : index
    %51 = vector.load %arg8[%c1_54, %c0_55, %c0_56] : memref<3x16x32xf32, #tpu.memory_space<vmem>>, vector<1x2x32xf32>
    %52 = vector.shape_cast %51 : vector<1x2x32xf32> to vector<2x32xf32>
    %c2_57 = arith.constant 2 : index
    %c0_58 = arith.constant 0 : index
    %c0_59 = arith.constant 0 : index
    %53 = vector.load %arg8[%c2_57, %c0_58, %c0_59] : memref<3x16x32xf32, #tpu.memory_space<vmem>>, vector<1x2x32xf32>
    %54 = vector.shape_cast %53 : vector<1x2x32xf32> to vector<2x32xf32>
    %cst_60 = arith.constant dense<0.000000e+00> : vector<2x32xf32>
    %55 = tpu.matmul %48, %37, %cst_60 {dimension_numbers = #tpu.dot_dimension_numbers<[1], [0], [0], [1], [0, 0, 1, 1], [], []>} : vector<2x32xf32>, vector<32x32xf32>, vector<2x32xf32> -> vector<2x32xf32>
    %56 = arith.addf %50, %55 : vector<2x32xf32>
    %57 = vector.broadcast %43 : vector<1x32xf32> to vector<2x32xf32>
    %58 = arith.addf %56, %57 : vector<2x32xf32>
    %59 = arith.negf %58 : vector<2x32xf32>
    %60 = math.exp %59 : vector<2x32xf32>
    %cst_61 = arith.constant 1.000000e+00 : f32
    %61 = vector.broadcast %cst_61 : f32 to vector<2x32xf32>
    %62 = arith.addf %61, %60 : vector<2x32xf32>
    %63 = arith.divf %61, %62 : vector<2x32xf32>
    %cst_62 = arith.constant dense<0.000000e+00> : vector<2x32xf32>
    %64 = tpu.matmul %48, %39, %cst_62 {dimension_numbers = #tpu.dot_dimension_numbers<[1], [0], [0], [1], [0, 0, 1, 1], [], []>} : vector<2x32xf32>, vector<32x32xf32>, vector<2x32xf32> -> vector<2x32xf32>
    %65 = arith.addf %52, %64 : vector<2x32xf32>
    %66 = vector.broadcast %45 : vector<1x32xf32> to vector<2x32xf32>
    %67 = arith.addf %65, %66 : vector<2x32xf32>
    %68 = arith.negf %67 : vector<2x32xf32>
    %69 = math.exp %68 : vector<2x32xf32>
    %cst_63 = arith.constant 1.000000e+00 : f32
    %70 = vector.broadcast %cst_63 : f32 to vector<2x32xf32>
    %71 = arith.addf %70, %69 : vector<2x32xf32>
    %72 = arith.divf %70, %71 : vector<2x32xf32>
    %cst_64 = arith.constant dense<0.000000e+00> : vector<2x32xf32>
    %73 = tpu.matmul %48, %41, %cst_64 {dimension_numbers = #tpu.dot_dimension_numbers<[1], [0], [0], [1], [0, 0, 1, 1], [], []>} : vector<2x32xf32>, vector<32x32xf32>, vector<2x32xf32> -> vector<2x32xf32>
    %74 = vector.broadcast %47 : vector<1x32xf32> to vector<2x32xf32>
    %75 = arith.addf %73, %74 : vector<2x32xf32>
    %76 = arith.mulf %63, %75 : vector<2x32xf32>
    %77 = arith.addf %54, %76 : vector<2x32xf32>
    %78 = math.tanh %77 : vector<2x32xf32>
    %cst_65 = arith.constant 1.000000e+00 : f32
    %79 = vector.broadcast %cst_65 : f32 to vector<2x32xf32>
    %80 = arith.subf %79, %72 : vector<2x32xf32>
    %81 = arith.mulf %80, %78 : vector<2x32xf32>
    %82 = arith.mulf %72, %48 : vector<2x32xf32>
    %83 = arith.addf %81, %82 : vector<2x32xf32>
    %c0_66 = arith.constant 0 : index
    %c0_67 = arith.constant 0 : index
    %c0_68 = arith.constant 0 : index
    %84 = vector.load %arg7[%c0_66, %c0_67, %c0_68] : memref<8x2x32xf32, #tpu.memory_space<vmem>>, vector<1x2x32xf32>
    %85 = vector.shape_cast %84 : vector<1x2x32xf32> to vector<2x32xf32>
    %86 = vector.shape_cast %83 : vector<2x32xf32> to vector<1x2x32xf32>
    tpu.vector_store %arg7[%c0_66, %c0_67, %c0_68], %86 {strides = array<i32>} : memref<8x2x32xf32, #tpu.memory_space<vmem>>, vector<1x2x32xf32>,
    %c0_69 = arith.constant 0 : index
    %c2_70 = arith.constant 2 : index
    %c0_71 = arith.constant 0 : index
    %87 = vector.load %arg8[%c0_69, %c2_70, %c0_71] : memref<3x16x32xf32, #tpu.memory_space<vmem>>, vector<1x2x32xf32>
    %88 = vector.shape_cast %87 : vector<1x2x32xf32> to vector<2x32xf32>
    %c1_72 = arith.constant 1 : index
    %c2_73 = arith.constant 2 : index
    %c0_74 = arith.constant 0 : index
    %89 = vector.load %arg8[%c1_72, %c2_73, %c0_74] : memref<3x16x32xf32, #tpu.memory_space<vmem>>, vector<1x2x32xf32>
    %90 = vector.shape_cast %89 : vector<1x2x32xf32> to vector<2x32xf32>
    %c2_75 = arith.constant 2 : index
    %c2_76 = arith.constant 2 : index
    %c0_77 = arith.constant 0 : index
    %91 = vector.load %arg8[%c2_75, %c2_76, %c0_77] : memref<3x16x32xf32, #tpu.memory_space<vmem>>, vector<1x2x32xf32>
    %92 = vector.shape_cast %91 : vector<1x2x32xf32> to vector<2x32xf32>
    %cst_78 = arith.constant dense<0.000000e+00> : vector<2x32xf32>
    %93 = tpu.matmul %83, %37, %cst_78 {dimension_numbers = #tpu.dot_dimension_numbers<[1], [0], [0], [1], [0, 0, 1, 1], [], []>} : vector<2x32xf32>, vector<32x32xf32>, vector<2x32xf32> -> vector<2x32xf32>
    %94 = arith.addf %88, %93 : vector<2x32xf32>
    %95 = vector.broadcast %43 : vector<1x32xf32> to vector<2x32xf32>
    %96 = arith.addf %94, %95 : vector<2x32xf32>
    %97 = arith.negf %96 : vector<2x32xf32>
    %98 = math.exp %97 : vector<2x32xf32>
    %cst_79 = arith.constant 1.000000e+00 : f32
    %99 = vector.broadcast %cst_79 : f32 to vector<2x32xf32>
    %100 = arith.addf %99, %98 : vector<2x32xf32>
    %101 = arith.divf %99, %100 : vector<2x32xf32>
    %cst_80 = arith.constant dense<0.000000e+00> : vector<2x32xf32>
    %102 = tpu.matmul %83, %39, %cst_80 {dimension_numbers = #tpu.dot_dimension_numbers<[1], [0], [0], [1], [0, 0, 1, 1], [], []>} : vector<2x32xf32>, vector<32x32xf32>, vector<2x32xf32> -> vector<2x32xf32>
    %103 = arith.addf %90, %102 : vector<2x32xf32>
    %104 = vector.broadcast %45 : vector<1x32xf32> to vector<2x32xf32>
    %105 = arith.addf %103, %104 : vector<2x32xf32>
    %106 = arith.negf %105 : vector<2x32xf32>
    %107 = math.exp %106 : vector<2x32xf32>
    %cst_81 = arith.constant 1.000000e+00 : f32
    %108 = vector.broadcast %cst_81 : f32 to vector<2x32xf32>
    %109 = arith.addf %108, %107 : vector<2x32xf32>
    %110 = arith.divf %108, %109 : vector<2x32xf32>
    %cst_82 = arith.constant dense<0.000000e+00> : vector<2x32xf32>
    %111 = tpu.matmul %83, %41, %cst_82 {dimension_numbers = #tpu.dot_dimension_numbers<[1], [0], [0], [1], [0, 0, 1, 1], [], []>} : vector<2x32xf32>, vector<32x32xf32>, vector<2x32xf32> -> vector<2x32xf32>
    %112 = vector.broadcast %47 : vector<1x32xf32> to vector<2x32xf32>
    %113 = arith.addf %111, %112 : vector<2x32xf32>
    %114 = arith.mulf %101, %113 : vector<2x32xf32>
    %115 = arith.addf %92, %114 : vector<2x32xf32>
    %116 = math.tanh %115 : vector<2x32xf32>
    %cst_83 = arith.constant 1.000000e+00 : f32
    %117 = vector.broadcast %cst_83 : f32 to vector<2x32xf32>
    %118 = arith.subf %117, %110 : vector<2x32xf32>
    %119 = arith.mulf %118, %116 : vector<2x32xf32>
    %120 = arith.mulf %110, %83 : vector<2x32xf32>
    %121 = arith.addf %119, %120 : vector<2x32xf32>
    %c1_84 = arith.constant 1 : index
    %c0_85 = arith.constant 0 : index
    %c0_86 = arith.constant 0 : index
    %122 = vector.load %arg7[%c1_84, %c0_85, %c0_86] : memref<8x2x32xf32, #tpu.memory_space<vmem>>, vector<1x2x32xf32>
    %123 = vector.shape_cast %122 : vector<1x2x32xf32> to vector<2x32xf32>
    %124 = vector.shape_cast %121 : vector<2x32xf32> to vector<1x2x32xf32>
    tpu.vector_store %arg7[%c1_84, %c0_85, %c0_86], %124 {strides = array<i32>} : memref<8x2x32xf32, #tpu.memory_space<vmem>>, vector<1x2x32xf32>,
    %c0_87 = arith.constant 0 : index
    %c4 = arith.constant 4 : index
    %c0_88 = arith.constant 0 : index
    %125 = vector.load %arg8[%c0_87, %c4, %c0_88] : memref<3x16x32xf32, #tpu.memory_space<vmem>>, vector<1x2x32xf32>
    %126 = vector.shape_cast %125 : vector<1x2x32xf32> to vector<2x32xf32>
    %c1_89 = arith.constant 1 : index
    %c4_90 = arith.constant 4 : index
    %c0_91 = arith.constant 0 : index
    %127 = vector.load %arg8[%c1_89, %c4_90, %c0_91] : memref<3x16x32xf32, #tpu.memory_space<vmem>>, vector<1x2x32xf32>
    %128 = vector.shape_cast %127 : vector<1x2x32xf32> to vector<2x32xf32>
    %c2_92 = arith.constant 2 : index
    %c4_93 = arith.constant 4 : index
    %c0_94 = arith.constant 0 : index
    %129 = vector.load %arg8[%c2_92, %c4_93, %c0_94] : memref<3x16x32xf32, #tpu.memory_space<vmem>>, vector<1x2x32xf32>
    %130 = vector.shape_cast %129 : vector<1x2x32xf32> to vector<2x32xf32>
    %cst_95 = arith.constant dense<0.000000e+00> : vector<2x32xf32>
    %131 = tpu.matmul %121, %37, %cst_95 {dimension_numbers = #tpu.dot_dimension_numbers<[1], [0], [0], [1], [0, 0, 1, 1], [], []>} : vector<2x32xf32>, vector<32x32xf32>, vector<2x32xf32> -> vector<2x32xf32>
    %132 = arith.addf %126, %131 : vector<2x32xf32>
    %133 = vector.broadcast %43 : vector<1x32xf32> to vector<2x32xf32>
    %134 = arith.addf %132, %133 : vector<2x32xf32>
    %135 = arith.negf %134 : vector<2x32xf32>
    %136 = math.exp %135 : vector<2x32xf32>
    %cst_96 = arith.constant 1.000000e+00 : f32
    %137 = vector.broadcast %cst_96 : f32 to vector<2x32xf32>
    %138 = arith.addf %137, %136 : vector<2x32xf32>
    %139 = arith.divf %137, %138 : vector<2x32xf32>
    %cst_97 = arith.constant dense<0.000000e+00> : vector<2x32xf32>
    %140 = tpu.matmul %121, %39, %cst_97 {dimension_numbers = #tpu.dot_dimension_numbers<[1], [0], [0], [1], [0, 0, 1, 1], [], []>} : vector<2x32xf32>, vector<32x32xf32>, vector<2x32xf32> -> vector<2x32xf32>
    %141 = arith.addf %128, %140 : vector<2x32xf32>
    %142 = vector.broadcast %45 : vector<1x32xf32> to vector<2x32xf32>
    %143 = arith.addf %141, %142 : vector<2x32xf32>
    %144 = arith.negf %143 : vector<2x32xf32>
    %145 = math.exp %144 : vector<2x32xf32>
    %cst_98 = arith.constant 1.000000e+00 : f32
    %146 = vector.broadcast %cst_98 : f32 to vector<2x32xf32>
    %147 = arith.addf %146, %145 : vector<2x32xf32>
    %148 = arith.divf %146, %147 : vector<2x32xf32>
    %cst_99 = arith.constant dense<0.000000e+00> : vector<2x32xf32>
    %149 = tpu.matmul %121, %41, %cst_99 {dimension_numbers = #tpu.dot_dimension_numbers<[1], [0], [0], [1], [0, 0, 1, 1], [], []>} : vector<2x32xf32>, vector<32x32xf32>, vector<2x32xf32> -> vector<2x32xf32>
    %150 = vector.broadcast %47 : vector<1x32xf32> to vector<2x32xf32>
    %151 = arith.addf %149, %150 : vector<2x32xf32>
    %152 = arith.mulf %139, %151 : vector<2x32xf32>
    %153 = arith.addf %130, %152 : vector<2x32xf32>
    %154 = math.tanh %153 : vector<2x32xf32>
    %cst_100 = arith.constant 1.000000e+00 : f32
    %155 = vector.broadcast %cst_100 : f32 to vector<2x32xf32>
    %156 = arith.subf %155, %148 : vector<2x32xf32>
    %157 = arith.mulf %156, %154 : vector<2x32xf32>
    %158 = arith.mulf %148, %121 : vector<2x32xf32>
    %159 = arith.addf %157, %158 : vector<2x32xf32>
    %c2_101 = arith.constant 2 : index
    %c0_102 = arith.constant 0 : index
    %c0_103 = arith.constant 0 : index
    %160 = vector.load %arg7[%c2_101, %c0_102, %c0_103] : memref<8x2x32xf32, #tpu.memory_space<vmem>>, vector<1x2x32xf32>
    %161 = vector.shape_cast %160 : vector<1x2x32xf32> to vector<2x32xf32>
    %162 = vector.shape_cast %159 : vector<2x32xf32> to vector<1x2x32xf32>
    tpu.vector_store %arg7[%c2_101, %c0_102, %c0_103], %162 {strides = array<i32>} : memref<8x2x32xf32, #tpu.memory_space<vmem>>, vector<1x2x32xf32>,
    %c0_104 = arith.constant 0 : index
    %c6 = arith.constant 6 : index
    %c0_105 = arith.constant 0 : index
    %163 = vector.load %arg8[%c0_104, %c6, %c0_105] : memref<3x16x32xf32, #tpu.memory_space<vmem>>, vector<1x2x32xf32>
    %164 = vector.shape_cast %163 : vector<1x2x32xf32> to vector<2x32xf32>
    %c1_106 = arith.constant 1 : index
    %c6_107 = arith.constant 6 : index
    %c0_108 = arith.constant 0 : index
    %165 = vector.load %arg8[%c1_106, %c6_107, %c0_108] : memref<3x16x32xf32, #tpu.memory_space<vmem>>, vector<1x2x32xf32>
    %166 = vector.shape_cast %165 : vector<1x2x32xf32> to vector<2x32xf32>
    %c2_109 = arith.constant 2 : index
    %c6_110 = arith.constant 6 : index
    %c0_111 = arith.constant 0 : index
    %167 = vector.load %arg8[%c2_109, %c6_110, %c0_111] : memref<3x16x32xf32, #tpu.memory_space<vmem>>, vector<1x2x32xf32>
    %168 = vector.shape_cast %167 : vector<1x2x32xf32> to vector<2x32xf32>
    %cst_112 = arith.constant dense<0.000000e+00> : vector<2x32xf32>
    %169 = tpu.matmul %159, %37, %cst_112 {dimension_numbers = #tpu.dot_dimension_numbers<[1], [0], [0], [1], [0, 0, 1, 1], [], []>} : vector<2x32xf32>, vector<32x32xf32>, vector<2x32xf32> -> vector<2x32xf32>
    %170 = arith.addf %164, %169 : vector<2x32xf32>
    %171 = vector.broadcast %43 : vector<1x32xf32> to vector<2x32xf32>
    %172 = arith.addf %170, %171 : vector<2x32xf32>
    %173 = arith.negf %172 : vector<2x32xf32>
    %174 = math.exp %173 : vector<2x32xf32>
    %cst_113 = arith.constant 1.000000e+00 : f32
    %175 = vector.broadcast %cst_113 : f32 to vector<2x32xf32>
    %176 = arith.addf %175, %174 : vector<2x32xf32>
    %177 = arith.divf %175, %176 : vector<2x32xf32>
    %cst_114 = arith.constant dense<0.000000e+00> : vector<2x32xf32>
    %178 = tpu.matmul %159, %39, %cst_114 {dimension_numbers = #tpu.dot_dimension_numbers<[1], [0], [0], [1], [0, 0, 1, 1], [], []>} : vector<2x32xf32>, vector<32x32xf32>, vector<2x32xf32> -> vector<2x32xf32>
    %179 = arith.addf %166, %178 : vector<2x32xf32>
    %180 = vector.broadcast %45 : vector<1x32xf32> to vector<2x32xf32>
    %181 = arith.addf %179, %180 : vector<2x32xf32>
    %182 = arith.negf %181 : vector<2x32xf32>
    %183 = math.exp %182 : vector<2x32xf32>
    %cst_115 = arith.constant 1.000000e+00 : f32
    %184 = vector.broadcast %cst_115 : f32 to vector<2x32xf32>
    %185 = arith.addf %184, %183 : vector<2x32xf32>
    %186 = arith.divf %184, %185 : vector<2x32xf32>
    %cst_116 = arith.constant dense<0.000000e+00> : vector<2x32xf32>
    %187 = tpu.matmul %159, %41, %cst_116 {dimension_numbers = #tpu.dot_dimension_numbers<[1], [0], [0], [1], [0, 0, 1, 1], [], []>} : vector<2x32xf32>, vector<32x32xf32>, vector<2x32xf32> -> vector<2x32xf32>
    %188 = vector.broadcast %47 : vector<1x32xf32> to vector<2x32xf32>
    %189 = arith.addf %187, %188 : vector<2x32xf32>
    %190 = arith.mulf %177, %189 : vector<2x32xf32>
    %191 = arith.addf %168, %190 : vector<2x32xf32>
    %192 = math.tanh %191 : vector<2x32xf32>
    %cst_117 = arith.constant 1.000000e+00 : f32
    %193 = vector.broadcast %cst_117 : f32 to vector<2x32xf32>
    %194 = arith.subf %193, %186 : vector<2x32xf32>
    %195 = arith.mulf %194, %192 : vector<2x32xf32>
    %196 = arith.mulf %186, %159 : vector<2x32xf32>
    %197 = arith.addf %195, %196 : vector<2x32xf32>
    %c3 = arith.constant 3 : index
    %c0_118 = arith.constant 0 : index
    %c0_119 = arith.constant 0 : index
    %198 = vector.load %arg7[%c3, %c0_118, %c0_119] : memref<8x2x32xf32, #tpu.memory_space<vmem>>, vector<1x2x32xf32>
    %199 = vector.shape_cast %198 : vector<1x2x32xf32> to vector<2x32xf32>
    %200 = vector.shape_cast %197 : vector<2x32xf32> to vector<1x2x32xf32>
    tpu.vector_store %arg7[%c3, %c0_118, %c0_119], %200 {strides = array<i32>} : memref<8x2x32xf32, #tpu.memory_space<vmem>>, vector<1x2x32xf32>,
    %c0_120 = arith.constant 0 : index
    %c8 = arith.constant 8 : index
    %c0_121 = arith.constant 0 : index
    %201 = vector.load %arg8[%c0_120, %c8, %c0_121] : memref<3x16x32xf32, #tpu.memory_space<vmem>>, vector<1x2x32xf32>
    %202 = vector.shape_cast %201 : vector<1x2x32xf32> to vector<2x32xf32>
    %c1_122 = arith.constant 1 : index
    %c8_123 = arith.constant 8 : index
    %c0_124 = arith.constant 0 : index
    %203 = vector.load %arg8[%c1_122, %c8_123, %c0_124] : memref<3x16x32xf32, #tpu.memory_space<vmem>>, vector<1x2x32xf32>
    %204 = vector.shape_cast %203 : vector<1x2x32xf32> to vector<2x32xf32>
    %c2_125 = arith.constant 2 : index
    %c8_126 = arith.constant 8 : index
    %c0_127 = arith.constant 0 : index
    %205 = vector.load %arg8[%c2_125, %c8_126, %c0_127] : memref<3x16x32xf32, #tpu.memory_space<vmem>>, vector<1x2x32xf32>
    %206 = vector.shape_cast %205 : vector<1x2x32xf32> to vector<2x32xf32>
    %cst_128 = arith.constant dense<0.000000e+00> : vector<2x32xf32>
    %207 = tpu.matmul %197, %37, %cst_128 {dimension_numbers = #tpu.dot_dimension_numbers<[1], [0], [0], [1], [0, 0, 1, 1], [], []>} : vector<2x32xf32>, vector<32x32xf32>, vector<2x32xf32> -> vector<2x32xf32>
    %208 = arith.addf %202, %207 : vector<2x32xf32>
    %209 = vector.broadcast %43 : vector<1x32xf32> to vector<2x32xf32>
    %210 = arith.addf %208, %209 : vector<2x32xf32>
    %211 = arith.negf %210 : vector<2x32xf32>
    %212 = math.exp %211 : vector<2x32xf32>
    %cst_129 = arith.constant 1.000000e+00 : f32
    %213 = vector.broadcast %cst_129 : f32 to vector<2x32xf32>
    %214 = arith.addf %213, %212 : vector<2x32xf32>
    %215 = arith.divf %213, %214 : vector<2x32xf32>
    %cst_130 = arith.constant dense<0.000000e+00> : vector<2x32xf32>
    %216 = tpu.matmul %197, %39, %cst_130 {dimension_numbers = #tpu.dot_dimension_numbers<[1], [0], [0], [1], [0, 0, 1, 1], [], []>} : vector<2x32xf32>, vector<32x32xf32>, vector<2x32xf32> -> vector<2x32xf32>
    %217 = arith.addf %204, %216 : vector<2x32xf32>
    %218 = vector.broadcast %45 : vector<1x32xf32> to vector<2x32xf32>
    %219 = arith.addf %217, %218 : vector<2x32xf32>
    %220 = arith.negf %219 : vector<2x32xf32>
    %221 = math.exp %220 : vector<2x32xf32>
    %cst_131 = arith.constant 1.000000e+00 : f32
    %222 = vector.broadcast %cst_131 : f32 to vector<2x32xf32>
    %223 = arith.addf %222, %221 : vector<2x32xf32>
    %224 = arith.divf %222, %223 : vector<2x32xf32>
    %cst_132 = arith.constant dense<0.000000e+00> : vector<2x32xf32>
    %225 = tpu.matmul %197, %41, %cst_132 {dimension_numbers = #tpu.dot_dimension_numbers<[1], [0], [0], [1], [0, 0, 1, 1], [], []>} : vector<2x32xf32>, vector<32x32xf32>, vector<2x32xf32> -> vector<2x32xf32>
    %226 = vector.broadcast %47 : vector<1x32xf32> to vector<2x32xf32>
    %227 = arith.addf %225, %226 : vector<2x32xf32>
    %228 = arith.mulf %215, %227 : vector<2x32xf32>
    %229 = arith.addf %206, %228 : vector<2x32xf32>
    %230 = math.tanh %229 : vector<2x32xf32>
    %cst_133 = arith.constant 1.000000e+00 : f32
    %231 = vector.broadcast %cst_133 : f32 to vector<2x32xf32>
    %232 = arith.subf %231, %224 : vector<2x32xf32>
    %233 = arith.mulf %232, %230 : vector<2x32xf32>
    %234 = arith.mulf %224, %197 : vector<2x32xf32>
    %235 = arith.addf %233, %234 : vector<2x32xf32>
    %c4_134 = arith.constant 4 : index
    %c0_135 = arith.constant 0 : index
    %c0_136 = arith.constant 0 : index
    %236 = vector.load %arg7[%c4_134, %c0_135, %c0_136] : memref<8x2x32xf32, #tpu.memory_space<vmem>>, vector<1x2x32xf32>
    %237 = vector.shape_cast %236 : vector<1x2x32xf32> to vector<2x32xf32>
    %238 = vector.shape_cast %235 : vector<2x32xf32> to vector<1x2x32xf32>
    tpu.vector_store %arg7[%c4_134, %c0_135, %c0_136], %238 {strides = array<i32>} : memref<8x2x32xf32, #tpu.memory_space<vmem>>, vector<1x2x32xf32>,
    %c0_137 = arith.constant 0 : index
    %c10 = arith.constant 10 : index
    %c0_138 = arith.constant 0 : index
    %239 = vector.load %arg8[%c0_137, %c10, %c0_138] : memref<3x16x32xf32, #tpu.memory_space<vmem>>, vector<1x2x32xf32>
    %240 = vector.shape_cast %239 : vector<1x2x32xf32> to vector<2x32xf32>
    %c1_139 = arith.constant 1 : index
    %c10_140 = arith.constant 10 : index
    %c0_141 = arith.constant 0 : index
    %241 = vector.load %arg8[%c1_139, %c10_140, %c0_141] : memref<3x16x32xf32, #tpu.memory_space<vmem>>, vector<1x2x32xf32>
    %242 = vector.shape_cast %241 : vector<1x2x32xf32> to vector<2x32xf32>
    %c2_142 = arith.constant 2 : index
    %c10_143 = arith.constant 10 : index
    %c0_144 = arith.constant 0 : index
    %243 = vector.load %arg8[%c2_142, %c10_143, %c0_144] : memref<3x16x32xf32, #tpu.memory_space<vmem>>, vector<1x2x32xf32>
    %244 = vector.shape_cast %243 : vector<1x2x32xf32> to vector<2x32xf32>
    %cst_145 = arith.constant dense<0.000000e+00> : vector<2x32xf32>
    %245 = tpu.matmul %235, %37, %cst_145 {dimension_numbers = #tpu.dot_dimension_numbers<[1], [0], [0], [1], [0, 0, 1, 1], [], []>} : vector<2x32xf32>, vector<32x32xf32>, vector<2x32xf32> -> vector<2x32xf32>
    %246 = arith.addf %240, %245 : vector<2x32xf32>
    %247 = vector.broadcast %43 : vector<1x32xf32> to vector<2x32xf32>
    %248 = arith.addf %246, %247 : vector<2x32xf32>
    %249 = arith.negf %248 : vector<2x32xf32>
    %250 = math.exp %249 : vector<2x32xf32>
    %cst_146 = arith.constant 1.000000e+00 : f32
    %251 = vector.broadcast %cst_146 : f32 to vector<2x32xf32>
    %252 = arith.addf %251, %250 : vector<2x32xf32>
    %253 = arith.divf %251, %252 : vector<2x32xf32>
    %cst_147 = arith.constant dense<0.000000e+00> : vector<2x32xf32>
    %254 = tpu.matmul %235, %39, %cst_147 {dimension_numbers = #tpu.dot_dimension_numbers<[1], [0], [0], [1], [0, 0, 1, 1], [], []>} : vector<2x32xf32>, vector<32x32xf32>, vector<2x32xf32> -> vector<2x32xf32>
    %255 = arith.addf %242, %254 : vector<2x32xf32>
    %256 = vector.broadcast %45 : vector<1x32xf32> to vector<2x32xf32>
    %257 = arith.addf %255, %256 : vector<2x32xf32>
    %258 = arith.negf %257 : vector<2x32xf32>
    %259 = math.exp %258 : vector<2x32xf32>
    %cst_148 = arith.constant 1.000000e+00 : f32
    %260 = vector.broadcast %cst_148 : f32 to vector<2x32xf32>
    %261 = arith.addf %260, %259 : vector<2x32xf32>
    %262 = arith.divf %260, %261 : vector<2x32xf32>
    %cst_149 = arith.constant dense<0.000000e+00> : vector<2x32xf32>
    %263 = tpu.matmul %235, %41, %cst_149 {dimension_numbers = #tpu.dot_dimension_numbers<[1], [0], [0], [1], [0, 0, 1, 1], [], []>} : vector<2x32xf32>, vector<32x32xf32>, vector<2x32xf32> -> vector<2x32xf32>
    %264 = vector.broadcast %47 : vector<1x32xf32> to vector<2x32xf32>
    %265 = arith.addf %263, %264 : vector<2x32xf32>
    %266 = arith.mulf %253, %265 : vector<2x32xf32>
    %267 = arith.addf %244, %266 : vector<2x32xf32>
    %268 = math.tanh %267 : vector<2x32xf32>
    %cst_150 = arith.constant 1.000000e+00 : f32
    %269 = vector.broadcast %cst_150 : f32 to vector<2x32xf32>
    %270 = arith.subf %269, %262 : vector<2x32xf32>
    %271 = arith.mulf %270, %268 : vector<2x32xf32>
    %272 = arith.mulf %262, %235 : vector<2x32xf32>
    %273 = arith.addf %271, %272 : vector<2x32xf32>
    %c5 = arith.constant 5 : index
    %c0_151 = arith.constant 0 : index
    %c0_152 = arith.constant 0 : index
    %274 = vector.load %arg7[%c5, %c0_151, %c0_152] : memref<8x2x32xf32, #tpu.memory_space<vmem>>, vector<1x2x32xf32>
    %275 = vector.shape_cast %274 : vector<1x2x32xf32> to vector<2x32xf32>
    %276 = vector.shape_cast %273 : vector<2x32xf32> to vector<1x2x32xf32>
    tpu.vector_store %arg7[%c5, %c0_151, %c0_152], %276 {strides = array<i32>} : memref<8x2x32xf32, #tpu.memory_space<vmem>>, vector<1x2x32xf32>,
    %c0_153 = arith.constant 0 : index
    %c12 = arith.constant 12 : index
    %c0_154 = arith.constant 0 : index
    %277 = vector.load %arg8[%c0_153, %c12, %c0_154] : memref<3x16x32xf32, #tpu.memory_space<vmem>>, vector<1x2x32xf32>
    %278 = vector.shape_cast %277 : vector<1x2x32xf32> to vector<2x32xf32>
    %c1_155 = arith.constant 1 : index
    %c12_156 = arith.constant 12 : index
    %c0_157 = arith.constant 0 : index
    %279 = vector.load %arg8[%c1_155, %c12_156, %c0_157] : memref<3x16x32xf32, #tpu.memory_space<vmem>>, vector<1x2x32xf32>
    %280 = vector.shape_cast %279 : vector<1x2x32xf32> to vector<2x32xf32>
    %c2_158 = arith.constant 2 : index
    %c12_159 = arith.constant 12 : index
    %c0_160 = arith.constant 0 : index
    %281 = vector.load %arg8[%c2_158, %c12_159, %c0_160] : memref<3x16x32xf32, #tpu.memory_space<vmem>>, vector<1x2x32xf32>
    %282 = vector.shape_cast %281 : vector<1x2x32xf32> to vector<2x32xf32>
    %cst_161 = arith.constant dense<0.000000e+00> : vector<2x32xf32>
    %283 = tpu.matmul %273, %37, %cst_161 {dimension_numbers = #tpu.dot_dimension_numbers<[1], [0], [0], [1], [0, 0, 1, 1], [], []>} : vector<2x32xf32>, vector<32x32xf32>, vector<2x32xf32> -> vector<2x32xf32>
    %284 = arith.addf %278, %283 : vector<2x32xf32>
    %285 = vector.broadcast %43 : vector<1x32xf32> to vector<2x32xf32>
    %286 = arith.addf %284, %285 : vector<2x32xf32>
    %287 = arith.negf %286 : vector<2x32xf32>
    %288 = math.exp %287 : vector<2x32xf32>
    %cst_162 = arith.constant 1.000000e+00 : f32
    %289 = vector.broadcast %cst_162 : f32 to vector<2x32xf32>
    %290 = arith.addf %289, %288 : vector<2x32xf32>
    %291 = arith.divf %289, %290 : vector<2x32xf32>
    %cst_163 = arith.constant dense<0.000000e+00> : vector<2x32xf32>
    %292 = tpu.matmul %273, %39, %cst_163 {dimension_numbers = #tpu.dot_dimension_numbers<[1], [0], [0], [1], [0, 0, 1, 1], [], []>} : vector<2x32xf32>, vector<32x32xf32>, vector<2x32xf32> -> vector<2x32xf32>
    %293 = arith.addf %280, %292 : vector<2x32xf32>
    %294 = vector.broadcast %45 : vector<1x32xf32> to vector<2x32xf32>
    %295 = arith.addf %293, %294 : vector<2x32xf32>
    %296 = arith.negf %295 : vector<2x32xf32>
    %297 = math.exp %296 : vector<2x32xf32>
    %cst_164 = arith.constant 1.000000e+00 : f32
    %298 = vector.broadcast %cst_164 : f32 to vector<2x32xf32>
    %299 = arith.addf %298, %297 : vector<2x32xf32>
    %300 = arith.divf %298, %299 : vector<2x32xf32>
    %cst_165 = arith.constant dense<0.000000e+00> : vector<2x32xf32>
    %301 = tpu.matmul %273, %41, %cst_165 {dimension_numbers = #tpu.dot_dimension_numbers<[1], [0], [0], [1], [0, 0, 1, 1], [], []>} : vector<2x32xf32>, vector<32x32xf32>, vector<2x32xf32> -> vector<2x32xf32>
    %302 = vector.broadcast %47 : vector<1x32xf32> to vector<2x32xf32>
    %303 = arith.addf %301, %302 : vector<2x32xf32>
    %304 = arith.mulf %291, %303 : vector<2x32xf32>
    %305 = arith.addf %282, %304 : vector<2x32xf32>
    %306 = math.tanh %305 : vector<2x32xf32>
    %cst_166 = arith.constant 1.000000e+00 : f32
    %307 = vector.broadcast %cst_166 : f32 to vector<2x32xf32>
    %308 = arith.subf %307, %300 : vector<2x32xf32>
    %309 = arith.mulf %308, %306 : vector<2x32xf32>
    %310 = arith.mulf %300, %273 : vector<2x32xf32>
    %311 = arith.addf %309, %310 : vector<2x32xf32>
    %c6_167 = arith.constant 6 : index
    %c0_168 = arith.constant 0 : index
    %c0_169 = arith.constant 0 : index
    %312 = vector.load %arg7[%c6_167, %c0_168, %c0_169] : memref<8x2x32xf32, #tpu.memory_space<vmem>>, vector<1x2x32xf32>
    %313 = vector.shape_cast %312 : vector<1x2x32xf32> to vector<2x32xf32>
    %314 = vector.shape_cast %311 : vector<2x32xf32> to vector<1x2x32xf32>
    tpu.vector_store %arg7[%c6_167, %c0_168, %c0_169], %314 {strides = array<i32>} : memref<8x2x32xf32, #tpu.memory_space<vmem>>, vector<1x2x32xf32>,
    %c0_170 = arith.constant 0 : index
    %c14 = arith.constant 14 : index
    %c0_171 = arith.constant 0 : index
    %315 = vector.load %arg8[%c0_170, %c14, %c0_171] : memref<3x16x32xf32, #tpu.memory_space<vmem>>, vector<1x2x32xf32>
    %316 = vector.shape_cast %315 : vector<1x2x32xf32> to vector<2x32xf32>
    %c1_172 = arith.constant 1 : index
    %c14_173 = arith.constant 14 : index
    %c0_174 = arith.constant 0 : index
    %317 = vector.load %arg8[%c1_172, %c14_173, %c0_174] : memref<3x16x32xf32, #tpu.memory_space<vmem>>, vector<1x2x32xf32>
    %318 = vector.shape_cast %317 : vector<1x2x32xf32> to vector<2x32xf32>
    %c2_175 = arith.constant 2 : index
    %c14_176 = arith.constant 14 : index
    %c0_177 = arith.constant 0 : index
    %319 = vector.load %arg8[%c2_175, %c14_176, %c0_177] : memref<3x16x32xf32, #tpu.memory_space<vmem>>, vector<1x2x32xf32>
    %320 = vector.shape_cast %319 : vector<1x2x32xf32> to vector<2x32xf32>
    %cst_178 = arith.constant dense<0.000000e+00> : vector<2x32xf32>
    %321 = tpu.matmul %311, %37, %cst_178 {dimension_numbers = #tpu.dot_dimension_numbers<[1], [0], [0], [1], [0, 0, 1, 1], [], []>} : vector<2x32xf32>, vector<32x32xf32>, vector<2x32xf32> -> vector<2x32xf32>
    %322 = arith.addf %316, %321 : vector<2x32xf32>
    %323 = vector.broadcast %43 : vector<1x32xf32> to vector<2x32xf32>
    %324 = arith.addf %322, %323 : vector<2x32xf32>
    %325 = arith.negf %324 : vector<2x32xf32>
    %326 = math.exp %325 : vector<2x32xf32>
    %cst_179 = arith.constant 1.000000e+00 : f32
    %327 = vector.broadcast %cst_179 : f32 to vector<2x32xf32>
    %328 = arith.addf %327, %326 : vector<2x32xf32>
    %329 = arith.divf %327, %328 : vector<2x32xf32>
    %cst_180 = arith.constant dense<0.000000e+00> : vector<2x32xf32>
    %330 = tpu.matmul %311, %39, %cst_180 {dimension_numbers = #tpu.dot_dimension_numbers<[1], [0], [0], [1], [0, 0, 1, 1], [], []>} : vector<2x32xf32>, vector<32x32xf32>, vector<2x32xf32> -> vector<2x32xf32>
    %331 = arith.addf %318, %330 : vector<2x32xf32>
    %332 = vector.broadcast %45 : vector<1x32xf32> to vector<2x32xf32>
    %333 = arith.addf %331, %332 : vector<2x32xf32>
    %334 = arith.negf %333 : vector<2x32xf32>
    %335 = math.exp %334 : vector<2x32xf32>
    %cst_181 = arith.constant 1.000000e+00 : f32
    %336 = vector.broadcast %cst_181 : f32 to vector<2x32xf32>
    %337 = arith.addf %336, %335 : vector<2x32xf32>
    %338 = arith.divf %336, %337 : vector<2x32xf32>
    %cst_182 = arith.constant dense<0.000000e+00> : vector<2x32xf32>
    %339 = tpu.matmul %311, %41, %cst_182 {dimension_numbers = #tpu.dot_dimension_numbers<[1], [0], [0], [1], [0, 0, 1, 1], [], []>} : vector<2x32xf32>, vector<32x32xf32>, vector<2x32xf32> -> vector<2x32xf32>
    %340 = vector.broadcast %47 : vector<1x32xf32> to vector<2x32xf32>
    %341 = arith.addf %339, %340 : vector<2x32xf32>
    %342 = arith.mulf %329, %341 : vector<2x32xf32>
    %343 = arith.addf %320, %342 : vector<2x32xf32>
    %344 = math.tanh %343 : vector<2x32xf32>
    %cst_183 = arith.constant 1.000000e+00 : f32
    %345 = vector.broadcast %cst_183 : f32 to vector<2x32xf32>
    %346 = arith.subf %345, %338 : vector<2x32xf32>
    %347 = arith.mulf %346, %344 : vector<2x32xf32>
    %348 = arith.mulf %338, %311 : vector<2x32xf32>
    %349 = arith.addf %347, %348 : vector<2x32xf32>
    %c7 = arith.constant 7 : index
    %c0_184 = arith.constant 0 : index
    %c0_185 = arith.constant 0 : index
    %350 = vector.load %arg7[%c7, %c0_184, %c0_185] : memref<8x2x32xf32, #tpu.memory_space<vmem>>, vector<1x2x32xf32>
    %351 = vector.shape_cast %350 : vector<1x2x32xf32> to vector<2x32xf32>
    %352 = vector.shape_cast %349 : vector<2x32xf32> to vector<1x2x32xf32>
    tpu.vector_store %arg7[%c7, %c0_184, %c0_185], %352 {strides = array<i32>} : memref<8x2x32xf32, #tpu.memory_space<vmem>>, vector<1x2x32xf32>,
    return
  }
}

</mosaic_0001>

<llo_original>
// kernel: tpu_custom_call.1
$region0: #{tpu_custom_call.1}
  #allocation0 [shape = 'u32[]', space=smem, size = 0x4, offset = 0x4, fixed_abs, tag = 'smem constant byte address 0x4 - core index']
  #allocation1 [shape = 'u32[144,128]{1,0:T(1,128)}', space=vmem, size = 0x12000, scoped, tag = 'internal scratch']
  #allocation2 [shape = 'f32[3,16,32]{2,1,0:T(8,128)}', space=vmem, size = 0x6000, scoped, tag = 'scratch operand']
  %s0 = inlined_call_operand.vmem [shape: f32[16,8], index: 0, kind: input, shape index: {}]
  %s1 = inlined_call_operand.vmem [shape: f32[16,8], index: 1, kind: input, shape index: {}]
  %s2 = inlined_call_operand.vmem [shape: f32[16,1], index: 2, kind: input, shape index: {}]
  %s3 = inlined_call_operand.vmem [shape: f32[3,8,32], index: 3, kind: input, shape index: {}]
  %s4 = inlined_call_operand.hbm [shape: f32[3,32,32], index: 4, kind: input, shape index: {}]
  %s5 = inlined_call_operand.vmem [shape: f32[3,1,32], index: 5, kind: input, shape index: {}]
  %s6 = inlined_call_operand.vmem [shape: f32[3,1,32], index: 6, kind: input, shape index: {}]
  %s7 = inlined_call_operand.hbm [shape: f32[8,2,32], index: 7, kind: output, shape index: {}]
  %s8 = sld [smem:[#allocation0]]
  $region42: #{tpu_custom_call.1} parent=0
    _
  %s10 = ssub.s32 1, %s8
  %s11 = scalar_select 0, %s10, %s8
  $region1: #{tpu_custom_call.1} parent=0
    #allocation3 [shape = 'u8[49152]{0}', space=vmem, size = 0xc000, scoped, tag = 'input window, operand 4, single buffered']
    #allocation4 [shape = 's32[1]{0}', space=sflag, size = 0x4, scoped, tag = 'scoped memory for tpu_custom_call.1']
    #allocation5 [shape = 's32[1]{0}', space=sflag, size = 0x4, scoped, tag = 'scoped memory for tpu_custom_call.1']
    #allocation6 [shape = 'u8[8192]{0}', space=vmem, size = 0x2000, scoped, tag = 'output window, operand 0, single buffered']
    %12 = vsyncpa [#allocation4], 0
    %13 = vsyncpa [#allocation5], 0
    // Predicated region
    $region2: #{tpu_custom_call.1} parent=1 // pred_check
      _
    $region3: #{tpu_custom_call.1} parent=1 // pred_check_branch
      %15 = sbr.rel (0) target = $region5
    $region4: #{tpu_custom_call.1} parent=1 // pred_region
      _
    $region5: #{tpu_custom_call.1} parent=1 // pred_fallthru
      _
    // Predicated region
    $region6: #{tpu_custom_call.1} parent=1 // pred_check
      _
    $region7: #{tpu_custom_call.1} parent=1 // pred_check_branch
      %17 = sbr.rel (0) target = $region9
    $region8: #{tpu_custom_call.1} parent=1 // pred_region
      _
    $region9: #{tpu_custom_call.1} parent=1 // pred_fallthru
      _
    // Predicated region
    $region10: #{tpu_custom_call.1} parent=1 // pred_check
      _
    $region11: #{tpu_custom_call.1} parent=1 // pred_check_branch
      %19 = sbr.rel (0) target = $region13
    $region12: #{tpu_custom_call.1} parent=1 // pred_region
      _
    $region13: #{tpu_custom_call.1} parent=1 // pred_fallthru
      _
    // Predicated region
    $region14: #{tpu_custom_call.1} parent=1 // pred_check
      _
    $region15: #{tpu_custom_call.1} parent=1 // pred_check_branch
      %21 = sbr.rel (0) target = $region17
    $region16: #{tpu_custom_call.1} parent=1 // pred_region
      _
    $region17: #{tpu_custom_call.1} parent=1 // pred_fallthru
      _
    // Predicated region
    $region18: #{tpu_custom_call.1} parent=1 // pred_check
      _
    $region19: #{tpu_custom_call.1} parent=1 // pred_check_branch
      %23 = sbr.rel (0) target = $region21
    $region20: #{tpu_custom_call.1} parent=1 // pred_region
      %s25 = ssub.s32 1536, 1536
      %26 = vsyncadd [#allocation4], %s25
      %s27 = sshll.u32 [#allocation3], 4
      %s28 = int_to_ptr.vmem [resolvable:$true] %s27
      %33 = dma.hbm_to_vmem [thread:$0]  %s4, 1536, %s28, [#allocation4], 128, 128, 8
    $region21: #{tpu_custom_call.1} parent=1 // pred_fallthru
      _
    // Predicated region
    $region22: #{tpu_custom_call.1} parent=1 // pred_check
      _
    $region23: #{tpu_custom_call.1} parent=1 // pred_check_branch
      %35 = sbr.rel (0) target = $region25
    $region24: #{tpu_custom_call.1} parent=1 // pred_region
      _
    $region25: #{tpu_custom_call.1} parent=1 // pred_fallthru
      _
    // Predicated region
    $region26: #{tpu_custom_call.1} parent=1 // pred_check
      _
    $region27: #{tpu_custom_call.1} parent=1 // pred_check_branch
      %37 = sbr.rel (0) target = $region29
    $region28: #{tpu_custom_call.1} parent=1 // pred_region
      _
    $region29: #{tpu_custom_call.1} parent=1 // pred_fallthru
      _
    // Predicated region
    $region30: #{tpu_custom_call.1} parent=1 // pred_check
      _
    $region31: #{tpu_custom_call.1} parent=1 // pred_check_branch
      %39 = sbr.rel (0) target = $region33
    $region32: #{tpu_custom_call.1} parent=1 // pred_region
      %40 = dma.done [#allocation4], 1536
    $region33: #{tpu_custom_call.1} parent=1 // pred_fallthru
      _
    %v41 = vld [vmem:[%s0] sm:$0xff]
    %v42 = vld [vmem:[%s0 + $0x8] sm:$0xff]
    %v43 = vld [vmem:[%s1] sm:$0xff]
    %v44 = vld [vmem:[%s1 + $0x8] sm:$0xff]
    %v45 = vadd.f32 %v41, %v43
    %v46 = vadd.f32 %v42, %v44
    %v47 = vld [vmem:[%s2] sm:$0xff]
    %v48 = vld [vmem:[%s2 + $0x8] sm:$0xff]
    %50 = vset.pattern.permute.xlu0 0
    %51 = vperm.xlu0 %50, %v47
    %v52 = vpop.permute.xlu0 %51
    %55 = vset.pattern.permute.xlu0 0
    %56 = vperm.xlu0 %55, %v48
    %v57 = vpop.permute.xlu0 %56
    %v59 = vmul.f32 %v45, %v52
    %v60 = vmul.f32 %v46, %v57
    %v61 = vld [vmem:[%s3] sm:$0xff]
    %v62 = vld [vmem:[%s5] sm:$0x1]
    %v64 = vlaneseq
    %v65 = vshrl.u32 %v64, 7
    %v66 = vsub.s32 0, %v65
    %v67 = vrot.slane %v62, %v66
    %vm69 = vcmask 64512
    %v71 = vsel %vm69, %v59, 0
    %v74 = vsel %vm69, %v60, 0
    %76 = vmatprep.subr.mxu0 0.0
    %77 = vmatpush1.msra.mxu0 0.0
    %78 = vmatprep.subr.mxu0 0.0
    %79 = vmatpush1.msra.mxu0 0.0
    %80 = vmatprep.subr.mxu0 0.0
    %81 = vmatpush1.msra.mxu0 0.0
    %82 = vmatprep.subr.mxu0 0.0
    %83 = vmatpush1.msra.mxu0 0.0
    %84 = vmatprep.subr.mxu0 0.0
    %85 = vmatpush1.msra.mxu0 0.0
    %86 = vmatprep.subr.mxu0 0.0
    %87 = vmatpush1.msra.mxu0 0.0
    %88 = vmatprep.subr.mxu0 0.0
    %89 = vmatpush1.msra.mxu0 0.0
    %90 = vmatprep.subr.mxu0 0.0
    %91 = vmatpush1.msra.mxu0 0.0
    %92 = vmatprep.subr.mxu0 0.0
    %93 = vmatpush1.msra.mxu0 0.0
    %94 = vmatprep.subr.mxu0 0.0
    %95 = vmatpush1.msra.mxu0 0.0
    %96 = vmatprep.subr.mxu0 0.0
    %97 = vmatpush1.msra.mxu0 0.0
    %98 = vmatprep.subr.mxu0 0.0
    %99 = vmatpush1.msra.mxu0 0.0
    %100 = vmatprep.subr.mxu0 0.0
    %101 = vmatpush1.msra.mxu0 0.0
    %102 = vmatprep.subr.mxu0 0.0
    %103 = vmatpush1.msra.mxu0 0.0
    %104 = vmatprep.subr.mxu0 0.0
    %105 = vmatpush1.msra.mxu0 0.0
    %106 = vmatprep.subr.mxu0 0.0
    %107 = vmatpush1.msra.mxu0 %v61
    %108 = vmatprep.subr.mxu0 0.0
    %109 = vmatpush2.msra.mxu0 0.0
    %110 = vmatprep.subr.mxu0 0.0
    %111 = vmatpush2.msra.mxu0 0.0
    %112 = vmatprep.subr.mxu0 0.0
    %113 = vmatpush2.msra.mxu0 0.0
    %114 = vmatprep.subr.mxu0 0.0
    %115 = vmatpush2.msra.mxu0 0.0
    %116 = vmatprep.subr.mxu0 0.0
    %117 = vmatpush2.msra.mxu0 0.0
    %118 = vmatprep.subr.mxu0 0.0
    %119 = vmatpush2.msra.mxu0 0.0
    %120 = vmatprep.subr.mxu0 0.0
    %121 = vmatpush2.msra.mxu0 0.0
    %122 = vmatprep.subr.mxu0 0.0
    %123 = vmatpush2.msra.mxu0 0.0
    %124 = vmatprep.subr.mxu0 0.0
    %125 = vmatpush2.msra.mxu0 0.0
    %126 = vmatprep.subr.mxu0 0.0
    %127 = vmatpush2.msra.mxu0 0.0
    %128 = vmatprep.subr.mxu0 0.0
    %129 = vmatpush2.msra.mxu0 0.0
    %130 = vmatprep.subr.mxu0 0.0
    %131 = vmatpush2.msra.mxu0 0.0
    %132 = vmatprep.subr.mxu0 0.0
    %133 = vmatpush2.msra.mxu0 0.0
    %134 = vmatprep.subr.mxu0 0.0
    %135 = vmatpush2.msra.mxu0 0.0
    %136 = vmatprep.subr.mxu0 0.0
    %137 = vmatpush2.msra.mxu0 0.0
    %138 = vmatprep.subr.mxu0 0.0
    %139 = vmatpush2.msra.mxu0 0.0
    %140 = vmatprep.mubr.f32.mxu0 0.0
    %141 = vmatmul.mubr.f32.gmra.mxu0 %v71
    %v142 = vpop.f32.mrf.mxu0
    %v143 = vadd.f32 %v67, %v142
    %v144 = vpop.f32.mrf.mxu0
    %145 = vmatprep.mubr.f32.mxu0 0.0
    %146 = vmatmul.mubr.f32.gmra.mxu0 %v74
    %v147 = vpop.f32.mrf.mxu0
    %v148 = vadd.f32 %v67, %v147
    %v149 = vpop.f32.mrf.mxu0
    %150 = vdwg.mxu0
    %vm151 = vcmask 261120
    %152 = vst.msk [vmem:[#allocation2] sm:$0xff] %vm151, %v143
    %153 = vst.msk [vmem:[#allocation2 + $0x8] sm:$0xff] %vm151, %v148
    %s154 = scalar_lea.vmem %s3, 8
    %v155 = vld [vmem:[%s154] sm:$0xff]
    %s156 = scalar_lea.vmem %s5, 1
    %v157 = vld [vmem:[%s156] sm:$0x1]
    %v159 = vlaneseq
    %v160 = vshrl.u32 %v159, 7
    %v161 = vsub.s32 0, %v160
    %v162 = vrot.slane %v157, %v161
    %164 = vmatprep.subr.mxu0 0.0
    %165 = vmatpush1.msra.mxu0 0.0
    %166 = vmatprep.subr.mxu0 0.0
    %167 = vmatpush1.msra.mxu0 0.0
    %168 = vmatprep.subr.mxu0 0.0
    %169 = vmatpush1.msra.mxu0 0.0
    %170 = vmatprep.subr.mxu0 0.0
    %171 = vmatpush1.msra.mxu0 0.0
    %172 = vmatprep.subr.mxu0 0.0
    %173 = vmatpush1.msra.mxu0 0.0
    %174 = vmatprep.subr.mxu0 0.0
    %175 = vmatpush1.msra.mxu0 0.0
    %176 = vmatprep.subr.mxu0 0.0
    %177 = vmatpush1.msra.mxu0 0.0
    %178 = vmatprep.subr.mxu0 0.0
    %179 = vmatpush1.msra.mxu0 0.0
    %180 = vmatprep.subr.mxu0 0.0
    %181 = vmatpush1.msra.mxu0 0.0
    %182 = vmatprep.subr.mxu0 0.0
    %183 = vmatpush1.msra.mxu0 0.0
    %184 = vmatprep.subr.mxu0 0.0
    %185 = vmatpush1.msra.mxu0 0.0
    %186 = vmatprep.subr.mxu0 0.0
    %187 = vmatpush1.msra.mxu0 0.0
    %188 = vmatprep.subr.mxu0 0.0
    %189 = vmatpush1.msra.mxu0 0.0
    %190 = vmatprep.subr.mxu0 0.0
    %191 = vmatpush1.msra.mxu0 0.0
    %192 = vmatprep.subr.mxu0 0.0
    %193 = vmatpush1.msra.mxu0 0.0
    %194 = vmatprep.subr.mxu0 0.0
    %195 = vmatpush1.msra.mxu0 %v155
    %196 = vmatprep.subr.mxu0 0.0
    %197 = vmatpush2.msra.mxu0 0.0
    %198 = vmatprep.subr.mxu0 0.0
    %199 = vmatpush2.msra.mxu0 0.0
    %200 = vmatprep.subr.mxu0 0.0
    %201 = vmatpush2.msra.mxu0 0.0
    %202 = vmatprep.subr.mxu0 0.0
    %203 = vmatpush2.msra.mxu0 0.0
    %204 = vmatprep.subr.mxu0 0.0
    %205 = vmatpush2.msra.mxu0 0.0
    %206 = vmatprep.subr.mxu0 0.0
    %207 = vmatpush2.msra.mxu0 0.0
    %208 = vmatprep.subr.mxu0 0.0
    %209 = vmatpush2.msra.mxu0 0.0
    %210 = vmatprep.subr.mxu0 0.0
    %211 = vmatpush2.msra.mxu0 0.0
    %212 = vmatprep.subr.mxu0 0.0
    %213 = vmatpush2.msra.mxu0 0.0
    %214 = vmatprep.subr.mxu0 0.0
    %215 = vmatpush2.msra.mxu0 0.0
    %216 = vmatprep.subr.mxu0 0.0
    %217 = vmatpush2.msra.mxu0 0.0
    %218 = vmatprep.subr.mxu0 0.0
    %219 = vmatpush2.msra.mxu0 0.0
    %220 = vmatprep.subr.mxu0 0.0
    %221 = vmatpush2.msra.mxu0 0.0
    %222 = vmatprep.subr.mxu0 0.0
    %223 = vmatpush2.msra.mxu0 0.0
    %224 = vmatprep.subr.mxu0 0.0
    %225 = vmatpush2.msra.mxu0 0.0
    %226 = vmatprep.subr.mxu0 0.0
    %227 = vmatpush2.msra.mxu0 0.0
    %228 = vmatprep.mubr.f32.mxu0 0.0
    %229 = vmatmul.mubr.f32.gmra.mxu0 %v71
    %v230 = vpop.f32.mrf.mxu0
    %v231 = vadd.f32 %v162, %v230
    %v232 = vpop.f32.mrf.mxu0
    %233 = vmatprep.mubr.f32.mxu0 0.0
    %234 = vmatmul.mubr.f32.gmra.mxu0 %v74
    %v235 = vpop.f32.mrf.mxu0
    %v236 = vadd.f32 %v162, %v235
    %v237 = vpop.f32.mrf.mxu0
    %238 = vdwg.mxu0
    %s239 = scalar_lea.vmem [#allocation2], 16
    %240 = vst.msk [vmem:[%s239] sm:$0xff] %vm151, %v231
    %241 = vst.msk [vmem:[%s239 + $0x8] sm:$0xff] %vm151, %v236
    %s242 = scalar_lea.vmem %s3, 16
    %v243 = vld [vmem:[%s242] sm:$0xff]
    %s244 = scalar_lea.vmem %s5, 2
    %v245 = vld [vmem:[%s244] sm:$0x1]
    %v247 = vlaneseq
    %v248 = vshrl.u32 %v247, 7
    %v249 = vsub.s32 0, %v248
    %v250 = vrot.slane %v245, %v249
    %252 = vmatprep.subr.mxu0 0.0
    %253 = vmatpush1.msra.mxu0 0.0
    %254 = vmatprep.subr.mxu0 0.0
    %255 = vmatpush1.msra.mxu0 0.0
    %256 = vmatprep.subr.mxu0 0.0
    %257 = vmatpush1.msra.mxu0 0.0
    %258 = vmatprep.subr.mxu0 0.0
    %259 = vmatpush1.msra.mxu0 0.0
    %260 = vmatprep.subr.mxu0 0.0
    %261 = vmatpush1.msra.mxu0 0.0
    %262 = vmatprep.subr.mxu0 0.0
    %263 = vmatpush1.msra.mxu0 0.0
    %264 = vmatprep.subr.mxu0 0.0
    %265 = vmatpush1.msra.mxu0 0.0
    %266 = vmatprep.subr.mxu0 0.0
    %267 = vmatpush1.msra.mxu0 0.0
    %268 = vmatprep.subr.mxu0 0.0
    %269 = vmatpush1.msra.mxu0 0.0
    %270 = vmatprep.subr.mxu0 0.0
    %271 = vmatpush1.msra.mxu0 0.0
    %272 = vmatprep.subr.mxu0 0.0
    %273 = vmatpush1.msra.mxu0 0.0
    %274 = vmatprep.subr.mxu0 0.0
    %275 = vmatpush1.msra.mxu0 0.0
    %276 = vmatprep.subr.mxu0 0.0
    %277 = vmatpush1.msra.mxu0 0.0
    %278 = vmatprep.subr.mxu0 0.0
    %279 = vmatpush1.msra.mxu0 0.0
    %280 = vmatprep.subr.mxu0 0.0
    %281 = vmatpush1.msra.mxu0 0.0
    %282 = vmatprep.subr.mxu0 0.0
    %283 = vmatpush1.msra.mxu0 %v243
    %284 = vmatprep.subr.mxu0 0.0
    %285 = vmatpush2.msra.mxu0 0.0
    %286 = vmatprep.subr.mxu0 0.0
    %287 = vmatpush2.msra.mxu0 0.0
    %288 = vmatprep.subr.mxu0 0.0
    %289 = vmatpush2.msra.mxu0 0.0
    %290 = vmatprep.subr.mxu0 0.0
    %291 = vmatpush2.msra.mxu0 0.0
    %292 = vmatprep.subr.mxu0 0.0
    %293 = vmatpush2.msra.mxu0 0.0
    %294 = vmatprep.subr.mxu0 0.0
    %295 = vmatpush2.msra.mxu0 0.0
    %296 = vmatprep.subr.mxu0 0.0
    %297 = vmatpush2.msra.mxu0 0.0
    %298 = vmatprep.subr.mxu0 0.0
    %299 = vmatpush2.msra.mxu0 0.0
    %300 = vmatprep.subr.mxu0 0.0
    %301 = vmatpush2.msra.mxu0 0.0
    %302 = vmatprep.subr.mxu0 0.0
    %303 = vmatpush2.msra.mxu0 0.0
    %304 = vmatprep.subr.mxu0 0.0
    %305 = vmatpush2.msra.mxu0 0.0
    %306 = vmatprep.subr.mxu0 0.0
    %307 = vmatpush2.msra.mxu0 0.0
    %308 = vmatprep.subr.mxu0 0.0
    %309 = vmatpush2.msra.mxu0 0.0
    %310 = vmatprep.subr.mxu0 0.0
    %311 = vmatpush2.msra.mxu0 0.0
    %312 = vmatprep.subr.mxu0 0.0
    %313 = vmatpush2.msra.mxu0 0.0
    %314 = vmatprep.subr.mxu0 0.0
    %315 = vmatpush2.msra.mxu0 0.0
    %316 = vmatprep.mubr.f32.mxu0 0.0
    %317 = vmatmul.mubr.f32.gmra.mxu0 %v71
    %v318 = vpop.f32.mrf.mxu0
    %v319 = vadd.f32 %v250, %v318
    %v320 = vpop.f32.mrf.mxu0
    %321 = vmatprep.mubr.f32.mxu0 0.0
    %322 = vmatmul.mubr.f32.gmra.mxu0 %v74
    %v323 = vpop.f32.mrf.mxu0
    %v324 = vadd.f32 %v250, %v323
    %v325 = vpop.f32.mrf.mxu0
    %326 = vdwg.mxu0
    %s327 = scalar_lea.vmem [#allocation2], 32
    %328 = vst.msk [vmem:[%s327] sm:$0xff] %vm151, %v319
    %329 = vst.msk [vmem:[%s327 + $0x8] sm:$0xff] %vm151, %v324
    %v330 = vld [vmem:[#allocation3] sm:$0xff]
    %v331 = vld [vmem:[#allocation3 + $0x8] sm:$0xff]
    %v332 = vld [vmem:[#allocation3 + $0x10] sm:$0xff]
    %v333 = vld [vmem:[#allocation3 + $0x18] sm:$0xff]
    %s334 = scalar_lea.vmem [#allocation3], 32
    %v335 = vld [vmem:[%s334] sm:$0xff]
    %v336 = vld [vmem:[%s334 + $0x8] sm:$0xff]
    %v337 = vld [vmem:[%s334 + $0x10] sm:$0xff]
    %v338 = vld [vmem:[%s334 + $0x18] sm:$0xff]
    %s339 = scalar_lea.vmem [#allocation3], 64
    %v340 = vld [vmem:[%s339] sm:$0xff]
    %v341 = vld [vmem:[%s339 + $0x8] sm:$0xff]
    %v342 = vld [vmem:[%s339 + $0x10] sm:$0xff]
    %v343 = vld [vmem:[%s339 + $0x18] sm:$0xff]
    %v344 = vld [vmem:[%s6] sm:$0x1]
    %s345 = scalar_lea.vmem %s6, 1
    %v346 = vld [vmem:[%s345] sm:$0x1]
    %s347 = scalar_lea.vmem %s6, 2
    %v348 = vld [vmem:[%s347] sm:$0x1]
    %v349 = vld [vmem:[#allocation2] sm:$0x3]
    %v350 = vld [vmem:[%s239] sm:$0x3]
    %v351 = vld [vmem:[%s327] sm:$0x3]
    %v353 = vsel %vm151, 0.0, 0
    %355 = vmatprep.subr.mxu0 0.0
    %356 = vmatpush1.msra.mxu0 0.0
    %357 = vmatprep.subr.mxu0 0.0
    %358 = vmatpush1.msra.mxu0 0.0
    %359 = vmatprep.subr.mxu0 0.0
    %360 = vmatpush1.msra.mxu0 0.0
    %361 = vmatprep.subr.mxu0 0.0
    %362 = vmatpush1.msra.mxu0 0.0
    %363 = vmatprep.subr.mxu0 0.0
    %364 = vmatpush1.msra.mxu0 0.0
    %365 = vmatprep.subr.mxu0 0.0
    %366 = vmatpush1.msra.mxu0 0.0
    %367 = vmatprep.subr.mxu0 0.0
    %368 = vmatpush1.msra.mxu0 0.0
    %369 = vmatprep.subr.mxu0 0.0
    %370 = vmatpush1.msra.mxu0 0.0
    %371 = vmatprep.subr.mxu0 0.0
    %372 = vmatpush1.msra.mxu0 0.0
    %373 = vmatprep.subr.mxu0 0.0
    %374 = vmatpush1.msra.mxu0 0.0
    %375 = vmatprep.subr.mxu0 0.0
    %376 = vmatpush1.msra.mxu0 0.0
    %377 = vmatprep.subr.mxu0 0.0
    %378 = vmatpush1.msra.mxu0 0.0
    %379 = vmatprep.subr.mxu0 0.0
    %380 = vmatpush1.msra.mxu0 %v333
    %381 = vmatprep.subr.mxu0 0.0
    %382 = vmatpush1.msra.mxu0 %v332
    %383 = vmatprep.subr.mxu0 0.0
    %384 = vmatpush1.msra.mxu0 %v331
    %385 = vmatprep.subr.mxu0 0.0
    %386 = vmatpush1.msra.mxu0 %v330
    %387 = vmatprep.subr.mxu0 0.0
    %388 = vmatpush2.msra.mxu0 0.0
    %389 = vmatprep.subr.mxu0 0.0
    %390 = vmatpush2.msra.mxu0 0.0
    %391 = vmatprep.subr.mxu0 0.0
    %392 = vmatpush2.msra.mxu0 0.0
    %393 = vmatprep.subr.mxu0 0.0
    %394 = vmatpush2.msra.mxu0 0.0
    %395 = vmatprep.subr.mxu0 0.0
    %396 = vmatpush2.msra.mxu0 0.0
    %397 = vmatprep.subr.mxu0 0.0
    %398 = vmatpush2.msra.mxu0 0.0
    %399 = vmatprep.subr.mxu0 0.0
    %400 = vmatpush2.msra.mxu0 0.0
    %401 = vmatprep.subr.mxu0 0.0
    %402 = vmatpush2.msra.mxu0 0.0
    %403 = vmatprep.subr.mxu0 0.0
    %404 = vmatpush2.msra.mxu0 0.0
    %405 = vmatprep.subr.mxu0 0.0
    %406 = vmatpush2.msra.mxu0 0.0
    %407 = vmatprep.subr.mxu0 0.0
    %408 = vmatpush2.msra.mxu0 0.0
    %409 = vmatprep.subr.mxu0 0.0
    %410 = vmatpush2.msra.mxu0 0.0
    %411 = vmatprep.subr.mxu0 0.0
    %412 = vmatpush2.msra.mxu0 0.0
    %413 = vmatprep.subr.mxu0 0.0
    %414 = vmatpush2.msra.mxu0 0.0
    %415 = vmatprep.subr.mxu0 0.0
    %416 = vmatpush2.msra.mxu0 0.0
    %417 = vmatprep.subr.mxu0 0.0
    %418 = vmatpush2.msra.mxu0 0.0
    %419 = vmatprep.mubr.f32.mxu0 0.0
    %420 = vmatmul.mubr.f32.gmra.mxu0 %v353
    %v421 = vpop.f32.mrf.mxu0
    %v422 = vadd.f32 0.0, %v421
    %v423 = vpop.f32.mrf.mxu0
    %424 = vdwg.mxu0
    %v425 = vadd.f32 %v349, %v422
    %v427 = vlaneseq
    %v428 = vshrl.u32 %v427, 7
    %v429 = vsub.s32 0, %v428
    %v430 = vrot.slane %v344, %v429
    %v432 = vadd.f32 %v425, %v430
    %v433 = vxor.u32 %v432, 2147483648
    %v434 = vmul.f32 %v433, 1.442695
    %v435 = vpow.pop %v434
    %v436 = vadd.f32 %v435, 1.0
    %v437 = vrcp.pop %v436
    %v438 = vmul.f32 1.0, %v437
    %439 = vmatprep.subr.mxu0 0.0
    %440 = vmatpush1.msra.mxu0 0.0
    %441 = vmatprep.subr.mxu0 0.0
    %442 = vmatpush1.msra.mxu0 0.0
    %443 = vmatprep.subr.mxu0 0.0
    %444 = vmatpush1.msra.mxu0 0.0
    %445 = vmatprep.subr.mxu0 0.0
    %446 = vmatpush1.msra.mxu0 0.0
    %447 = vmatprep.subr.mxu0 0.0
    %448 = vmatpush1.msra.mxu0 0.0
    %449 = vmatprep.subr.mxu0 0.0
    %450 = vmatpush1.msra.mxu0 0.0
    %451 = vmatprep.subr.mxu0 0.0
    %452 = vmatpush1.msra.mxu0 0.0
    %453 = vmatprep.subr.mxu0 0.0
    %454 = vmatpush1.msra.mxu0 0.0
    %455 = vmatprep.subr.mxu0 0.0
    %456 = vmatpush1.msra.mxu0 0.0
    %457 = vmatprep.subr.mxu0 0.0
    %458 = vmatpush1.msra.mxu0 0.0
    %459 = vmatprep.subr.mxu0 0.0
    %460 = vmatpush1.msra.mxu0 0.0
    %461 = vmatprep.subr.mxu0 0.0
    %462 = vmatpush1.msra.mxu0 0.0
    %463 = vmatprep.subr.mxu0 0.0
    %464 = vmatpush1.msra.mxu0 %v338
    %465 = vmatprep.subr.mxu0 0.0
    %466 = vmatpush1.msra.mxu0 %v337
    %467 = vmatprep.subr.mxu0 0.0
    %468 = vmatpush1.msra.mxu0 %v336
    %469 = vmatprep.subr.mxu0 0.0
    %470 = vmatpush1.msra.mxu0 %v335
    %471 = vmatprep.subr.mxu0 0.0
    %472 = vmatpush2.msra.mxu0 0.0
    %473 = vmatprep.subr.mxu0 0.0
    %474 = vmatpush2.msra.mxu0 0.0
    %475 = vmatprep.subr.mxu0 0.0
    %476 = vmatpush2.msra.mxu0 0.0
    %477 = vmatprep.subr.mxu0 0.0
    %478 = vmatpush2.msra.mxu0 0.0
    %479 = vmatprep.subr.mxu0 0.0
    %480 = vmatpush2.msra.mxu0 0.0
    %481 = vmatprep.subr.mxu0 0.0
    %482 = vmatpush2.msra.mxu0 0.0
    %483 = vmatprep.subr.mxu0 0.0
    %484 = vmatpush2.msra.mxu0 0.0
    %485 = vmatprep.subr.mxu0 0.0
    %486 = vmatpush2.msra.mxu0 0.0
    %487 = vmatprep.subr.mxu0 0.0
    %488 = vmatpush2.msra.mxu0 0.0
    %489 = vmatprep.subr.mxu0 0.0
    %490 = vmatpush2.msra.mxu0 0.0
    %491 = vmatprep.subr.mxu0 0.0
    %492 = vmatpush2.msra.mxu0 0.0
    %493 = vmatprep.subr.mxu0 0.0
    %494 = vmatpush2.msra.mxu0 0.0
    %495 = vmatprep.subr.mxu0 0.0
    %496 = vmatpush2.msra.mxu0 0.0
    %497 = vmatprep.subr.mxu0 0.0
    %498 = vmatpush2.msra.mxu0 0.0
    %499 = vmatprep.subr.mxu0 0.0
    %500 = vmatpush2.msra.mxu0 0.0
    %501 = vmatprep.subr.mxu0 0.0
    %502 = vmatpush2.msra.mxu0 0.0
    %503 = vmatprep.mubr.f32.mxu0 0.0
    %504 = vmatmul.mubr.f32.gmra.mxu0 %v353
    %v505 = vpop.f32.mrf.mxu0
    %v506 = vadd.f32 0.0, %v505
    %v507 = vpop.f32.mrf.mxu0
    %508 = vdwg.mxu0
    %v509 = vadd.f32 %v350, %v506
    %v511 = vlaneseq
    %v512 = vshrl.u32 %v511, 7
    %v513 = vsub.s32 0, %v512
    %v514 = vrot.slane %v346, %v513
    %v516 = vadd.f32 %v509, %v514
    %v517 = vxor.u32 %v516, 2147483648
    %v518 = vmul.f32 %v517, 1.442695
    %v519 = vpow.pop %v518
    %v520 = vadd.f32 %v519, 1.0
    %v521 = vrcp.pop %v520
    %v522 = vmul.f32 1.0, %v521
    %v524 = vlaneseq
    %v525 = vshrl.u32 %v524, 7
    %v526 = vsub.s32 0, %v525
    %v527 = vrot.slane %v348, %v526
    %529 = vmatprep.subr.mxu0 0.0
    %530 = vmatpush1.msra.mxu0 0.0
    %531 = vmatprep.subr.mxu0 0.0
    %532 = vmatpush1.msra.mxu0 0.0
    %533 = vmatprep.subr.mxu0 0.0
    %534 = vmatpush1.msra.mxu0 0.0
    %535 = vmatprep.subr.mxu0 0.0
    %536 = vmatpush1.msra.mxu0 0.0
    %537 = vmatprep.subr.mxu0 0.0
    %538 = vmatpush1.msra.mxu0 0.0
    %539 = vmatprep.subr.mxu0 0.0
    %540 = vmatpush1.msra.mxu0 0.0
    %541 = vmatprep.subr.mxu0 0.0
    %542 = vmatpush1.msra.mxu0 0.0
    %543 = vmatprep.subr.mxu0 0.0
    %544 = vmatpush1.msra.mxu0 0.0
    %545 = vmatprep.subr.mxu0 0.0
    %546 = vmatpush1.msra.mxu0 0.0
    %547 = vmatprep.subr.mxu0 0.0
    %548 = vmatpush1.msra.mxu0 0.0
    %549 = vmatprep.subr.mxu0 0.0
    %550 = vmatpush1.msra.mxu0 0.0
    %551 = vmatprep.subr.mxu0 0.0
    %552 = vmatpush1.msra.mxu0 0.0
    %553 = vmatprep.subr.mxu0 0.0
    %554 = vmatpush1.msra.mxu0 %v343
    %555 = vmatprep.subr.mxu0 0.0
    %556 = vmatpush1.msra.mxu0 %v342
    %557 = vmatprep.subr.mxu0 0.0
    %558 = vmatpush1.msra.mxu0 %v341
    %559 = vmatprep.subr.mxu0 0.0
    %560 = vmatpush1.msra.mxu0 %v340
    %561 = vmatprep.subr.mxu0 0.0
    %562 = vmatpush2.msra.mxu0 0.0
    %563 = vmatprep.subr.mxu0 0.0
    %564 = vmatpush2.msra.mxu0 0.0
    %565 = vmatprep.subr.mxu0 0.0
    %566 = vmatpush2.msra.mxu0 0.0
    %567 = vmatprep.subr.mxu0 0.0
    %568 = vmatpush2.msra.mxu0 0.0
    %569 = vmatprep.subr.mxu0 0.0
    %570 = vmatpush2.msra.mxu0 0.0
    %571 = vmatprep.subr.mxu0 0.0
    %572 = vmatpush2.msra.mxu0 0.0
    %573 = vmatprep.subr.mxu0 0.0
    %574 = vmatpush2.msra.mxu0 0.0
    %575 = vmatprep.subr.mxu0 0.0
    %576 = vmatpush2.msra.mxu0 0.0
    %577 = vmatprep.subr.mxu0 0.0
    %578 = vmatpush2.msra.mxu0 0.0
    %579 = vmatprep.subr.mxu0 0.0
    %580 = vmatpush2.msra.mxu0 0.0
    %581 = vmatprep.subr.mxu0 0.0
    %582 = vmatpush2.msra.mxu0 0.0
    %583 = vmatprep.subr.mxu0 0.0
    %584 = vmatpush2.msra.mxu0 0.0
    %585 = vmatprep.subr.mxu0 0.0
    %586 = vmatpush2.msra.mxu0 0.0
    %587 = vmatprep.subr.mxu0 0.0
    %588 = vmatpush2.msra.mxu0 0.0
    %589 = vmatprep.subr.mxu0 0.0
    %590 = vmatpush2.msra.mxu0 0.0
    %591 = vmatprep.subr.mxu0 0.0
    %592 = vmatpush2.msra.mxu0 0.0
    %593 = vmatprep.mubr.f32.mxu0 0.0
    %594 = vmatmul.mubr.f32.gmra.mxu0 %v353
    %v595 = vpop.f32.mrf.mxu0
    %v596 = vadd.f32 %v527, %v595
    %v597 = vpop.f32.mrf.mxu0
    %598 = vdwg.mxu0
    %v599 = vmul.f32 %v438, %v596
    %v600 = vadd.f32 %v351, %v599
    %v601 = vtanh.pop %v600
    %v602 = vsub.f32 1.0, %v522
    %v603 = vmul.f32 %v602, %v601
    %v604 = vmul.f32 %v522, 0.0
    %v605 = vadd.f32 %v603, %v604
    %vm606 = vcmask 254976
    %607 = vst.msk [vmem:[#allocation6] sm:$0x3] %vm606, %v605
    %v608 = vld [vmem:[#allocation2 + $0x2] sm:$0x3]
    %v609 = vld [vmem:[%s239 + $0x2] sm:$0x3]
    %v610 = vld [vmem:[%s327 + $0x2] sm:$0x3]
    %v612 = vsel %vm151, %v605, 0
    %614 = vmatprep.subr.mxu0 0.0
    %615 = vmatpush1.msra.mxu0 0.0
    %616 = vmatprep.subr.mxu0 0.0
    %617 = vmatpush1.msra.mxu0 0.0
    %618 = vmatprep.subr.mxu0 0.0
    %619 = vmatpush1.msra.mxu0 0.0
    %620 = vmatprep.subr.mxu0 0.0
    %621 = vmatpush1.msra.mxu0 0.0
    %622 = vmatprep.subr.mxu0 0.0
    %623 = vmatpush1.msra.mxu0 0.0
    %624 = vmatprep.subr.mxu0 0.0
    %625 = vmatpush1.msra.mxu0 0.0
    %626 = vmatprep.subr.mxu0 0.0
    %627 = vmatpush1.msra.mxu0 0.0
    %628 = vmatprep.subr.mxu0 0.0
    %629 = vmatpush1.msra.mxu0 0.0
    %630 = vmatprep.subr.mxu0 0.0
    %631 = vmatpush1.msra.mxu0 0.0
    %632 = vmatprep.subr.mxu0 0.0
    %633 = vmatpush1.msra.mxu0 0.0
    %634 = vmatprep.subr.mxu0 0.0
    %635 = vmatpush1.msra.mxu0 0.0
    %636 = vmatprep.subr.mxu0 0.0
    %637 = vmatpush1.msra.mxu0 0.0
    %638 = vmatprep.subr.mxu0 0.0
    %639 = vmatpush1.msra.mxu0 %v333
    %640 = vmatprep.subr.mxu0 0.0
    %641 = vmatpush1.msra.mxu0 %v332
    %642 = vmatprep.subr.mxu0 0.0
    %643 = vmatpush1.msra.mxu0 %v331
    %644 = vmatprep.subr.mxu0 0.0
    %645 = vmatpush1.msra.mxu0 %v330
    %646 = vmatprep.subr.mxu0 0.0
    %647 = vmatpush2.msra.mxu0 0.0
    %648 = vmatprep.subr.mxu0 0.0
    %649 = vmatpush2.msra.mxu0 0.0
    %650 = vmatprep.subr.mxu0 0.0
    %651 = vmatpush2.msra.mxu0 0.0
    %652 = vmatprep.subr.mxu0 0.0
    %653 = vmatpush2.msra.mxu0 0.0
    %654 = vmatprep.subr.mxu0 0.0
    %655 = vmatpush2.msra.mxu0 0.0
    %656 = vmatprep.subr.mxu0 0.0
    %657 = vmatpush2.msra.mxu0 0.0
    %658 = vmatprep.subr.mxu0 0.0
    %659 = vmatpush2.msra.mxu0 0.0
    %660 = vmatprep.subr.mxu0 0.0
    %661 = vmatpush2.msra.mxu0 0.0
    %662 = vmatprep.subr.mxu0 0.0
    %663 = vmatpush2.msra.mxu0 0.0
    %664 = vmatprep.subr.mxu0 0.0
    %665 = vmatpush2.msra.mxu0 0.0
    %666 = vmatprep.subr.mxu0 0.0
    %667 = vmatpush2.msra.mxu0 0.0
    %668 = vmatprep.subr.mxu0 0.0
    %669 = vmatpush2.msra.mxu0 0.0
    %670 = vmatprep.subr.mxu0 0.0
    %671 = vmatpush2.msra.mxu0 0.0
    %672 = vmatprep.subr.mxu0 0.0
    %673 = vmatpush2.msra.mxu0 0.0
    %674 = vmatprep.subr.mxu0 0.0
    %675 = vmatpush2.msra.mxu0 0.0
    %676 = vmatprep.subr.mxu0 0.0
    %677 = vmatpush2.msra.mxu0 0.0
    %678 = vmatprep.mubr.f32.mxu0 0.0
    %679 = vmatmul.mubr.f32.gmra.mxu0 %v612
    %v680 = vpop.f32.mrf.mxu0
    %v681 = vadd.f32 0.0, %v680
    %v682 = vpop.f32.mrf.mxu0
    %683 = vdwg.mxu0
    %v684 = vadd.f32 %v608, %v681
    %v685 = vadd.f32 %v684, %v430
    %v686 = vxor.u32 %v685, 2147483648
    %v687 = vmul.f32 %v686, 1.442695
    %v688 = vpow.pop %v687
    %v689 = vadd.f32 %v688, 1.0
    %v690 = vrcp.pop %v689
    %v691 = vmul.f32 1.0, %v690
    %692 = vmatprep.subr.mxu0 0.0
    %693 = vmatpush1.msra.mxu0 0.0
    %694 = vmatprep.subr.mxu0 0.0
    %695 = vmatpush1.msra.mxu0 0.0
    %696 = vmatprep.subr.mxu0 0.0
    %697 = vmatpush1.msra.mxu0 0.0
    %698 = vmatprep.subr.mxu0 0.0
    %699 = vmatpush1.msra.mxu0 0.0
    %700 = vmatprep.subr.mxu0 0.0
    %701 = vmatpush1.msra.mxu0 0.0
    %702 = vmatprep.subr.mxu0 0.0
    %703 = vmatpush1.msra.mxu0 0.0
    %704 = vmatprep.subr.mxu0 0.0
    %705 = vmatpush1.msra.mxu0 0.0
    %706 = vmatprep.subr.mxu0 0.0
    %707 = vmatpush1.msra.mxu0 0.0
    %708 = vmatprep.subr.mxu0 0.0
    %709 = vmatpush1.msra.mxu0 0.0
    %710 = vmatprep.subr.mxu0 0.0
    %711 = vmatpush1.msra.mxu0 0.0
    %712 = vmatprep.subr.mxu0 0.0
    %713 = vmatpush1.msra.mxu0 0.0
    %714 = vmatprep.subr.mxu0 0.0
    %715 = vmatpush1.msra.mxu0 0.0
    %716 = vmatprep.subr.mxu0 0.0
    %717 = vmatpush1.msra.mxu0 %v338
    %718 = vmatprep.subr.mxu0 0.0
    %719 = vmatpush1.msra.mxu0 %v337
    %720 = vmatprep.subr.mxu0 0.0
    %721 = vmatpush1.msra.mxu0 %v336
    %722 = vmatprep.subr.mxu0 0.0
    %723 = vmatpush1.msra.mxu0 %v335
    %724 = vmatprep.subr.mxu0 0.0
    %725 = vmatpush2.msra.mxu0 0.0
    %726 = vmatprep.subr.mxu0 0.0
    %727 = vmatpush2.msra.mxu0 0.0
    %728 = vmatprep.subr.mxu0 0.0
    %729 = vmatpush2.msra.mxu0 0.0
    %730 = vmatprep.subr.mxu0 0.0
    %731 = vmatpush2.msra.mxu0 0.0
    %732 = vmatprep.subr.mxu0 0.0
    %733 = vmatpush2.msra.mxu0 0.0
    %734 = vmatprep.subr.mxu0 0.0
    %735 = vmatpush2.msra.mxu0 0.0
    %736 = vmatprep.subr.mxu0 0.0
    %737 = vmatpush2.msra.mxu0 0.0
    %738 = vmatprep.subr.mxu0 0.0
    %739 = vmatpush2.msra.mxu0 0.0
    %740 = vmatprep.subr.mxu0 0.0
    %741 = vmatpush2.msra.mxu0 0.0
    %742 = vmatprep.subr.mxu0 0.0
    %743 = vmatpush2.msra.mxu0 0.0
    %744 = vmatprep.subr.mxu0 0.0
    %745 = vmatpush2.msra.mxu0 0.0
    %746 = vmatprep.subr.mxu0 0.0
    %747 = vmatpush2.msra.mxu0 0.0
    %748 = vmatprep.subr.mxu0 0.0
    %749 = vmatpush2.msra.mxu0 0.0
    %750 = vmatprep.subr.mxu0 0.0
    %751 = vmatpush2.msra.mxu0 0.0
    %752 = vmatprep.subr.mxu0 0.0
    %753 = vmatpush2.msra.mxu0 0.0
    %754 = vmatprep.subr.mxu0 0.0
    %755 = vmatpush2.msra.mxu0 0.0
    %756 = vmatprep.mubr.f32.mxu0 0.0
    %757 = vmatmul.mubr.f32.gmra.mxu0 %v612
    %v758 = vpop.f32.mrf.mxu0
    %v759 = vadd.f32 0.0, %v758
    %v760 = vpop.f32.mrf.mxu0
    %761 = vdwg.mxu0
    %v762 = vadd.f32 %v609, %v759
    %v763 = vadd.f32 %v762, %v514
    %v764 = vxor.u32 %v763, 2147483648
    %v765 = vmul.f32 %v764, 1.442695
    %v766 = vpow.pop %v765
    %v767 = vadd.f32 %v766, 1.0
    %v768 = vrcp.pop %v767
    %v769 = vmul.f32 1.0, %v768
    %770 = vmatprep.subr.mxu0 0.0
    %771 = vmatpush1.msra.mxu0 0.0
    %772 = vmatprep.subr.mxu0 0.0
    %773 = vmatpush1.msra.mxu0 0.0
    %774 = vmatprep.subr.mxu0 0.0
    %775 = vmatpush1.msra.mxu0 0.0
    %776 = vmatprep.subr.mxu0 0.0
    %777 = vmatpush1.msra.mxu0 0.0
    %778 = vmatprep.subr.mxu0 0.0
    %779 = vmatpush1.msra.mxu0 0.0
    %780 = vmatprep.subr.mxu0 0.0
    %781 = vmatpush1.msra.mxu0 0.0
    %782 = vmatprep.subr.mxu0 0.0
    %783 = vmatpush1.msra.mxu0 0.0
    %784 = vmatprep.subr.mxu0 0.0
    %785 = vmatpush1.msra.mxu0 0.0
    %786 = vmatprep.subr.mxu0 0.0
    %787 = vmatpush1.msra.mxu0 0.0
    %788 = vmatprep.subr.mxu0 0.0
    %789 = vmatpush1.msra.mxu0 0.0
    %790 = vmatprep.subr.mxu0 0.0
    %791 = vmatpush1.msra.mxu0 0.0
    %792 = vmatprep.subr.mxu0 0.0
    %793 = vmatpush1.msra.mxu0 0.0
    %794 = vmatprep.subr.mxu0 0.0
    %795 = vmatpush1.msra.mxu0 %v343
    %796 = vmatprep.subr.mxu0 0.0
    %797 = vmatpush1.msra.mxu0 %v342
    %798 = vmatprep.subr.mxu0 0.0
    %799 = vmatpush1.msra.mxu0 %v341
    %800 = vmatprep.subr.mxu0 0.0
    %801 = vmatpush1.msra.mxu0 %v340
    %802 = vmatprep.subr.mxu0 0.0
    %803 = vmatpush2.msra.mxu0 0.0
    %804 = vmatprep.subr.mxu0 0.0
    %805 = vmatpush2.msra.mxu0 0.0
    %806 = vmatprep.subr.mxu0 0.0
    %807 = vmatpush2.msra.mxu0 0.0
    %808 = vmatprep.subr.mxu0 0.0
    %809 = vmatpush2.msra.mxu0 0.0
    %810 = vmatprep.subr.mxu0 0.0
    %811 = vmatpush2.msra.mxu0 0.0
    %812 = vmatprep.subr.mxu0 0.0
    %813 = vmatpush2.msra.mxu0 0.0
    %814 = vmatprep.subr.mxu0 0.0
    %815 = vmatpush2.msra.mxu0 0.0
    %816 = vmatprep.subr.mxu0 0.0
    %817 = vmatpush2.msra.mxu0 0.0
    %818 = vmatprep.subr.mxu0 0.0
    %819 = vmatpush2.msra.mxu0 0.0
    %820 = vmatprep.subr.mxu0 0.0
    %821 = vmatpush2.msra.mxu0 0.0
    %822 = vmatprep.subr.mxu0 0.0
    %823 = vmatpush2.msra.mxu0 0.0
    %824 = vmatprep.subr.mxu0 0.0
    %825 = vmatpush2.msra.mxu0 0.0
    %826 = vmatprep.subr.mxu0 0.0
    %827 = vmatpush2.msra.mxu0 0.0
    %828 = vmatprep.subr.mxu0 0.0
    %829 = vmatpush2.msra.mxu0 0.0
    %830 = vmatprep.subr.mxu0 0.0
    %831 = vmatpush2.msra.mxu0 0.0
    %832 = vmatprep.subr.mxu0 0.0
    %833 = vmatpush2.msra.mxu0 0.0
    %834 = vmatprep.mubr.f32.mxu0 0.0
    %835 = vmatmul.mubr.f32.gmra.mxu0 %v612
    %v836 = vpop.f32.mrf.mxu0
    %v837 = vadd.f32 %v527, %v836
    %v838 = vpop.f32.mrf.mxu0
    %839 = vdwg.mxu0
    %v840 = vmul.f32 %v691, %v837
    %v841 = vadd.f32 %v610, %v840
    %v842 = vtanh.pop %v841
    %v843 = vsub.f32 1.0, %v769
    %v844 = vmul.f32 %v843, %v842
    %v845 = vmul.f32 %v769, %v605
    %v846 = vadd.f32 %v844, %v845
    %s847 = scalar_lea.vmem [#allocation6], 2
    %848 = vst.msk [vmem:[%s847] sm:$0x3] %vm606, %v846
    %v849 = vld [vmem:[#allocation2 + $0x4] sm:$0x3]
    %v850 = vld [vmem:[%s239 + $0x4] sm:$0x3]
    %v851 = vld [vmem:[%s327 + $0x4] sm:$0x3]
    %v853 = vsel %vm151, %v846, 0
    %855 = vmatprep.subr.mxu0 0.0
    %856 = vmatpush1.msra.mxu0 0.0
    %857 = vmatprep.subr.mxu0 0.0
    %858 = vmatpush1.msra.mxu0 0.0
    %859 = vmatprep.subr.mxu0 0.0
    %860 = vmatpush1.msra.mxu0 0.0
    %861 = vmatprep.subr.mxu0 0.0
    %862 = vmatpush1.msra.mxu0 0.0
    %863 = vmatprep.subr.mxu0 0.0
    %864 = vmatpush1.msra.mxu0 0.0
    %865 = vmatprep.subr.mxu0 0.0
    %866 = vmatpush1.msra.mxu0 0.0
    %867 = vmatprep.subr.mxu0 0.0
    %868 = vmatpush1.msra.mxu0 0.0
    %869 = vmatprep.subr.mxu0 0.0
    %870 = vmatpush1.msra.mxu0 0.0
    %871 = vmatprep.subr.mxu0 0.0
    %872 = vmatpush1.msra.mxu0 0.0
    %873 = vmatprep.subr.mxu0 0.0
    %874 = vmatpush1.msra.mxu0 0.0
    %875 = vmatprep.subr.mxu0 0.0
    %876 = vmatpush1.msra.mxu0 0.0
    %877 = vmatprep.subr.mxu0 0.0
    %878 = vmatpush1.msra.mxu0 0.0
    %879 = vmatprep.subr.mxu0 0.0
    %880 = vmatpush1.msra.mxu0 %v333
    %881 = vmatprep.subr.mxu0 0.0
    %882 = vmatpush1.msra.mxu0 %v332
    %883 = vmatprep.subr.mxu0 0.0
    %884 = vmatpush1.msra.mxu0 %v331
    %885 = vmatprep.subr.mxu0 0.0
    %886 = vmatpush1.msra.mxu0 %v330
    %887 = vmatprep.subr.mxu0 0.0
    %888 = vmatpush2.msra.mxu0 0.0
    %889 = vmatprep.subr.mxu0 0.0
    %890 = vmatpush2.msra.mxu0 0.0
    %891 = vmatprep.subr.mxu0 0.0
    %892 = vmatpush2.msra.mxu0 0.0
    %893 = vmatprep.subr.mxu0 0.0
    %894 = vmatpush2.msra.mxu0 0.0
    %895 = vmatprep.subr.mxu0 0.0
    %896 = vmatpush2.msra.mxu0 0.0
    %897 = vmatprep.subr.mxu0 0.0
    %898 = vmatpush2.msra.mxu0 0.0
    %899 = vmatprep.subr.mxu0 0.0
    %900 = vmatpush2.msra.mxu0 0.0
    %901 = vmatprep.subr.mxu0 0.0
    %902 = vmatpush2.msra.mxu0 0.0
    %903 = vmatprep.subr.mxu0 0.0
    %904 = vmatpush2.msra.mxu0 0.0
    %905 = vmatprep.subr.mxu0 0.0
    %906 = vmatpush2.msra.mxu0 0.0
    %907 = vmatprep.subr.mxu0 0.0
    %908 = vmatpush2.msra.mxu0 0.0
    %909 = vmatprep.subr.mxu0 0.0
    %910 = vmatpush2.msra.mxu0 0.0
    %911 = vmatprep.subr.mxu0 0.0
    %912 = vmatpush2.msra.mxu0 0.0
    %913 = vmatprep.subr.mxu0 0.0
    %914 = vmatpush2.msra.mxu0 0.0
    %915 = vmatprep.subr.mxu0 0.0
    %916 = vmatpush2.msra.mxu0 0.0
    %917 = vmatprep.subr.mxu0 0.0
    %918 = vmatpush2.msra.mxu0 0.0
    %919 = vmatprep.mubr.f32.mxu0 0.0
    %920 = vmatmul.mubr.f32.gmra.mxu0 %v853
    %v921 = vpop.f32.mrf.mxu0
    %v922 = vadd.f32 0.0, %v921
    %v923 = vpop.f32.mrf.mxu0
    %924 = vdwg.mxu0
    %v925 = vadd.f32 %v849, %v922
    %v926 = vadd.f32 %v925, %v430
    %v927 = vxor.u32 %v926, 2147483648
    %v928 = vmul.f32 %v927, 1.442695
    %v929 = vpow.pop %v928
    %v930 = vadd.f32 %v929, 1.0
    %v931 = vrcp.pop %v930
    %v932 = vmul.f32 1.0, %v931
    %933 = vmatprep.subr.mxu0 0.0
    %934 = vmatpush1.msra.mxu0 0.0
    %935 = vmatprep.subr.mxu0 0.0
    %936 = vmatpush1.msra.mxu0 0.0
    %937 = vmatprep.subr.mxu0 0.0
    %938 = vmatpush1.msra.mxu0 0.0
    %939 = vmatprep.subr.mxu0 0.0
    %940 = vmatpush1.msra.mxu0 0.0
    %941 = vmatprep.subr.mxu0 0.0
    %942 = vmatpush1.msra.mxu0 0.0
    %943 = vmatprep.subr.mxu0 0.0
    %944 = vmatpush1.msra.mxu0 0.0
    %945 = vmatprep.subr.mxu0 0.0
    %946 = vmatpush1.msra.mxu0 0.0
    %947 = vmatprep.subr.mxu0 0.0
    %948 = vmatpush1.msra.mxu0 0.0
    %949 = vmatprep.subr.mxu0 0.0
    %950 = vmatpush1.msra.mxu0 0.0
    %951 = vmatprep.subr.mxu0 0.0
    %952 = vmatpush1.msra.mxu0 0.0
    %953 = vmatprep.subr.mxu0 0.0
    %954 = vmatpush1.msra.mxu0 0.0
    %955 = vmatprep.subr.mxu0 0.0
    %956 = vmatpush1.msra.mxu0 0.0
    %957 = vmatprep.subr.mxu0 0.0
    %958 = vmatpush1.msra.mxu0 %v338
    %959 = vmatprep.subr.mxu0 0.0
    %960 = vmatpush1.msra.mxu0 %v337
    %961 = vmatprep.subr.mxu0 0.0
    %962 = vmatpush1.msra.mxu0 %v336
    %963 = vmatprep.subr.mxu0 0.0
    %964 = vmatpush1.msra.mxu0 %v335
    %965 = vmatprep.subr.mxu0 0.0
    %966 = vmatpush2.msra.mxu0 0.0
    %967 = vmatprep.subr.mxu0 0.0
    %968 = vmatpush2.msra.mxu0 0.0
    %969 = vmatprep.subr.mxu0 0.0
    %970 = vmatpush2.msra.mxu0 0.0
    %971 = vmatprep.subr.mxu0 0.0
    %972 = vmatpush2.msra.mxu0 0.0
    %973 = vmatprep.subr.mxu0 0.0
    %974 = vmatpush2.msra.mxu0 0.0
    %975 = vmatprep.subr.mxu0 0.0
    %976 = vmatpush2.msra.mxu0 0.0
    %977 = vmatprep.subr.mxu0 0.0
    %978 = vmatpush2.msra.mxu0 0.0
    %979 = vmatprep.subr.mxu0 0.0
    %980 = vmatpush2.msra.mxu0 0.0
    %981 = vmatprep.subr.mxu0 0.0
    %982 = vmatpush2.msra.mxu0 0.0
    %983 = vmatprep.subr.mxu0 0.0
    %984 = vmatpush2.msra.mxu0 0.0
    %985 = vmatprep.subr.mxu0 0.0
    %986 = vmatpush2.msra.mxu0 0.0
    %987 = vmatprep.subr.mxu0 0.0
    %988 = vmatpush2.msra.mxu0 0.0
    %989 = vmatprep.subr.mxu0 0.0
    %990 = vmatpush2.msra.mxu0 0.0
    %991 = vmatprep.subr.mxu0 0.0
    %992 = vmatpush2.msra.mxu0 0.0
    %993 = vmatprep.subr.mxu0 0.0
    %994 = vmatpush2.msra.mxu0 0.0
    %995 = vmatprep.subr.mxu0 0.0
    %996 = vmatpush2.msra.mxu0 0.0
    %997 = vmatprep.mubr.f32.mxu0 0.0
    %998 = vmatmul.mubr.f32.gmra.mxu0 %v853
    %v999 = vpop.f32.mrf.mxu0
    %v1000 = vadd.f32 0.0, %v999
    %v1001 = vpop.f32.mrf.mxu0
    %1002 = vdwg.mxu0
    %v1003 = vadd.f32 %v850, %v1000
    %v1004 = vadd.f32 %v1003, %v514
    %v1005 = vxor.u32 %v1004, 2147483648
    %v1006 = vmul.f32 %v1005, 1.442695
    %v1007 = vpow.pop %v1006
    %v1008 = vadd.f32 %v1007, 1.0
    %v1009 = vrcp.pop %v1008
    %v1010 = vmul.f32 1.0, %v1009
    %1011 = vmatprep.subr.mxu0 0.0
    %1012 = vmatpush1.msra.mxu0 0.0
    %1013 = vmatprep.subr.mxu0 0.0
    %1014 = vmatpush1.msra.mxu0 0.0
    %1015 = vmatprep.subr.mxu0 0.0
    %1016 = vmatpush1.msra.mxu0 0.0
    %1017 = vmatprep.subr.mxu0 0.0
    %1018 = vmatpush1.msra.mxu0 0.0
    %1019 = vmatprep.subr.mxu0 0.0
    %1020 = vmatpush1.msra.mxu0 0.0
    %1021 = vmatprep.subr.mxu0 0.0
    %1022 = vmatpush1.msra.mxu0 0.0
    %1023 = vmatprep.subr.mxu0 0.0
    %1024 = vmatpush1.msra.mxu0 0.0
    %1025 = vmatprep.subr.mxu0 0.0
    %1026 = vmatpush1.msra.mxu0 0.0
    %1027 = vmatprep.subr.mxu0 0.0
    %1028 = vmatpush1.msra.mxu0 0.0
    %1029 = vmatprep.subr.mxu0 0.0
    %1030 = vmatpush1.msra.mxu0 0.0
    %1031 = vmatprep.subr.mxu0 0.0
    %1032 = vmatpush1.msra.mxu0 0.0
    %1033 = vmatprep.subr.mxu0 0.0
    %1034 = vmatpush1.msra.mxu0 0.0
    %1035 = vmatprep.subr.mxu0 0.0
    %1036 = vmatpush1.msra.mxu0 %v343
    %1037 = vmatprep.subr.mxu0 0.0
    %1038 = vmatpush1.msra.mxu0 %v342
    %1039 = vmatprep.subr.mxu0 0.0
    %1040 = vmatpush1.msra.mxu0 %v341
    %1041 = vmatprep.subr.mxu0 0.0
    %1042 = vmatpush1.msra.mxu0 %v340
    %1043 = vmatprep.subr.mxu0 0.0
    %1044 = vmatpush2.msra.mxu0 0.0
    %1045 = vmatprep.subr.mxu0 0.0
    %1046 = vmatpush2.msra.mxu0 0.0
    %1047 = vmatprep.subr.mxu0 0.0
    %1048 = vmatpush2.msra.mxu0 0.0
    %1049 = vmatprep.subr.mxu0 0.0
    %1050 = vmatpush2.msra.mxu0 0.0
    %1051 = vmatprep.subr.mxu0 0.0
    %1052 = vmatpush2.msra.mxu0 0.0
    %1053 = vmatprep.subr.mxu0 0.0
    %1054 = vmatpush2.msra.mxu0 0.0
    %1055 = vmatprep.subr.mxu0 0.0
    %1056 = vmatpush2.msra.mxu0 0.0
    %1057 = vmatprep.subr.mxu0 0.0
    %1058 = vmatpush2.msra.mxu0 0.0
    %1059 = vmatprep.subr.mxu0 0.0
    %1060 = vmatpush2.msra.mxu0 0.0
    %1061 = vmatprep.subr.mxu0 0.0
    %1062 = vmatpush2.msra.mxu0 0.0
    %1063 = vmatprep.subr.mxu0 0.0
    %1064 = vmatpush2.msra.mxu0 0.0
    %1065 = vmatprep.subr.mxu0 0.0
    %1066 = vmatpush2.msra.mxu0 0.0
    %1067 = vmatprep.subr.mxu0 0.0
    %1068 = vmatpush2.msra.mxu0 0.0
    %1069 = vmatprep.subr.mxu0 0.0
    %1070 = vmatpush2.msra.mxu0 0.0
    %1071 = vmatprep.subr.mxu0 0.0
    %1072 = vmatpush2.msra.mxu0 0.0
    %1073 = vmatprep.subr.mxu0 0.0
    %1074 = vmatpush2.msra.mxu0 0.0
    %1075 = vmatprep.mubr.f32.mxu0 0.0
    %1076 = vmatmul.mubr.f32.gmra.mxu0 %v853
    %v1077 = vpop.f32.mrf.mxu0
    %v1078 = vadd.f32 %v527, %v1077
    %v1079 = vpop.f32.mrf.mxu0
    %1080 = vdwg.mxu0
    %v1081 = vmul.f32 %v932, %v1078
    %v1082 = vadd.f32 %v851, %v1081
    %v1083 = vtanh.pop %v1082
    %v1084 = vsub.f32 1.0, %v1010
    %v1085 = vmul.f32 %v1084, %v1083
    %v1086 = vmul.f32 %v1010, %v846
    %v1087 = vadd.f32 %v1085, %v1086
    %s1088 = scalar_lea.vmem [#allocation6], 4
    %1089 = vst.msk [vmem:[%s1088] sm:$0x3] %vm606, %v1087
    %v1090 = vld [vmem:[#allocation2 + $0x6] sm:$0x3]
    %v1091 = vld [vmem:[%s239 + $0x6] sm:$0x3]
    %v1092 = vld [vmem:[%s327 + $0x6] sm:$0x3]
    %v1094 = vsel %vm151, %v1087, 0
    %1096 = vmatprep.subr.mxu0 0.0
    %1097 = vmatpush1.msra.mxu0 0.0
    %1098 = vmatprep.subr.mxu0 0.0
    %1099 = vmatpush1.msra.mxu0 0.0
    %1100 = vmatprep.subr.mxu0 0.0
    %1101 = vmatpush1.msra.mxu0 0.0
    %1102 = vmatprep.subr.mxu0 0.0
    %1103 = vmatpush1.msra.mxu0 0.0
    %1104 = vmatprep.subr.mxu0 0.0
    %1105 = vmatpush1.msra.mxu0 0.0
    %1106 = vmatprep.subr.mxu0 0.0
    %1107 = vmatpush1.msra.mxu0 0.0
    %1108 = vmatprep.subr.mxu0 0.0
    %1109 = vmatpush1.msra.mxu0 0.0
    %1110 = vmatprep.subr.mxu0 0.0
    %1111 = vmatpush1.msra.mxu0 0.0
    %1112 = vmatprep.subr.mxu0 0.0
    %1113 = vmatpush1.msra.mxu0 0.0
    %1114 = vmatprep.subr.mxu0 0.0
    %1115 = vmatpush1.msra.mxu0 0.0
    %1116 = vmatprep.subr.mxu0 0.0
    %1117 = vmatpush1.msra.mxu0 0.0
    %1118 = vmatprep.subr.mxu0 0.0
    %1119 = vmatpush1.msra.mxu0 0.0
    %1120 = vmatprep.subr.mxu0 0.0
    %1121 = vmatpush1.msra.mxu0 %v333
    %1122 = vmatprep.subr.mxu0 0.0
    %1123 = vmatpush1.msra.mxu0 %v332
    %1124 = vmatprep.subr.mxu0 0.0
    %1125 = vmatpush1.msra.mxu0 %v331
    %1126 = vmatprep.subr.mxu0 0.0
    %1127 = vmatpush1.msra.mxu0 %v330
    %1128 = vmatprep.subr.mxu0 0.0
    %1129 = vmatpush2.msra.mxu0 0.0
    %1130 = vmatprep.subr.mxu0 0.0
    %1131 = vmatpush2.msra.mxu0 0.0
    %1132 = vmatprep.subr.mxu0 0.0
    %1133 = vmatpush2.msra.mxu0 0.0
    %1134 = vmatprep.subr.mxu0 0.0
    %1135 = vmatpush2.msra.mxu0 0.0
    %1136 = vmatprep.subr.mxu0 0.0
    %1137 = vmatpush2.msra.mxu0 0.0
    %1138 = vmatprep.subr.mxu0 0.0
    %1139 = vmatpush2.msra.mxu0 0.0
    %1140 = vmatprep.subr.mxu0 0.0
    %1141 = vmatpush2.msra.mxu0 0.0
    %1142 = vmatprep.subr.mxu0 0.0
    %1143 = vmatpush2.msra.mxu0 0.0
    %1144 = vmatprep.subr.mxu0 0.0
    %1145 = vmatpush2.msra.mxu0 0.0
    %1146 = vmatprep.subr.mxu0 0.0
    %1147 = vmatpush2.msra.mxu0 0.0
    %1148 = vmatprep.subr.mxu0 0.0
    %1149 = vmatpush2.msra.mxu0 0.0
    %1150 = vmatprep.subr.mxu0 0.0
    %1151 = vmatpush2.msra.mxu0 0.0
    %1152 = vmatprep.subr.mxu0 0.0
    %1153 = vmatpush2.msra.mxu0 0.0
    %1154 = vmatprep.subr.mxu0 0.0
    %1155 = vmatpush2.msra.mxu0 0.0
    %1156 = vmatprep.subr.mxu0 0.0
    %1157 = vmatpush2.msra.mxu0 0.0
    %1158 = vmatprep.subr.mxu0 0.0
    %1159 = vmatpush2.msra.mxu0 0.0
    %1160 = vmatprep.mubr.f32.mxu0 0.0
    %1161 = vmatmul.mubr.f32.gmra.mxu0 %v1094
    %v1162 = vpop.f32.mrf.mxu0
    %v1163 = vadd.f32 0.0, %v1162
    %v1164 = vpop.f32.mrf.mxu0
    %1165 = vdwg.mxu0
    %v1166 = vadd.f32 %v1090, %v1163
    %v1167 = vadd.f32 %v1166, %v430
    %v1168 = vxor.u32 %v1167, 2147483648
    %v1169 = vmul.f32 %v1168, 1.442695
    %v1170 = vpow.pop %v1169
    %v1171 = vadd.f32 %v1170, 1.0
    %v1172 = vrcp.pop %v1171
    %v1173 = vmul.f32 1.0, %v1172
    %1174 = vmatprep.subr.mxu0 0.0
    %1175 = vmatpush1.msra.mxu0 0.0
    %1176 = vmatprep.subr.mxu0 0.0
    %1177 = vmatpush1.msra.mxu0 0.0
    %1178 = vmatprep.subr.mxu0 0.0
    %1179 = vmatpush1.msra.mxu0 0.0
    %1180 = vmatprep.subr.mxu0 0.0
    %1181 = vmatpush1.msra.mxu0 0.0
    %1182 = vmatprep.subr.mxu0 0.0
    %1183 = vmatpush1.msra.mxu0 0.0
    %1184 = vmatprep.subr.mxu0 0.0
    %1185 = vmatpush1.msra.mxu0 0.0
    %1186 = vmatprep.subr.mxu0 0.0
    %1187 = vmatpush1.msra.mxu0 0.0
    %1188 = vmatprep.subr.mxu0 0.0
    %1189 = vmatpush1.msra.mxu0 0.0
    %1190 = vmatprep.subr.mxu0 0.0
    %1191 = vmatpush1.msra.mxu0 0.0
    %1192 = vmatprep.subr.mxu0 0.0
    %1193 = vmatpush1.msra.mxu0 0.0
    %1194 = vmatprep.subr.mxu0 0.0
    %1195 = vmatpush1.msra.mxu0 0.0
    %1196 = vmatprep.subr.mxu0 0.0
    %1197 = vmatpush1.msra.mxu0 0.0
    %1198 = vmatprep.subr.mxu0 0.0
    %1199 = vmatpush1.msra.mxu0 %v338
    %1200 = vmatprep.subr.mxu0 0.0
    %1201 = vmatpush1.msra.mxu0 %v337
    %1202 = vmatprep.subr.mxu0 0.0
    %1203 = vmatpush1.msra.mxu0 %v336
    %1204 = vmatprep.subr.mxu0 0.0
    %1205 = vmatpush1.msra.mxu0 %v335
    %1206 = vmatprep.subr.mxu0 0.0
    %1207 = vmatpush2.msra.mxu0 0.0
    %1208 = vmatprep.subr.mxu0 0.0
    %1209 = vmatpush2.msra.mxu0 0.0
    %1210 = vmatprep.subr.mxu0 0.0
    %1211 = vmatpush2.msra.mxu0 0.0
    %1212 = vmatprep.subr.mxu0 0.0
    %1213 = vmatpush2.msra.mxu0 0.0
    %1214 = vmatprep.subr.mxu0 0.0
    %1215 = vmatpush2.msra.mxu0 0.0
    %1216 = vmatprep.subr.mxu0 0.0
    %1217 = vmatpush2.msra.mxu0 0.0
    %1218 = vmatprep.subr.mxu0 0.0
    %1219 = vmatpush2.msra.mxu0 0.0
    %1220 = vmatprep.subr.mxu0 0.0
    %1221 = vmatpush2.msra.mxu0 0.0
    %1222 = vmatprep.subr.mxu0 0.0
    %1223 = vmatpush2.msra.mxu0 0.0
    %1224 = vmatprep.subr.mxu0 0.0
    %1225 = vmatpush2.msra.mxu0 0.0
    %1226 = vmatprep.subr.mxu0 0.0
    %1227 = vmatpush2.msra.mxu0 0.0
    %1228 = vmatprep.subr.mxu0 0.0
    %1229 = vmatpush2.msra.mxu0 0.0
    %1230 = vmatprep.subr.mxu0 0.0
    %1231 = vmatpush2.msra.mxu0 0.0
    %1232 = vmatprep.subr.mxu0 0.0
    %1233 = vmatpush2.msra.mxu0 0.0
    %1234 = vmatprep.subr.mxu0 0.0
    %1235 = vmatpush2.msra.mxu0 0.0
    %1236 = vmatprep.subr.mxu0 0.0
    %1237 = vmatpush2.msra.mxu0 0.0
    %1238 = vmatprep.mubr.f32.mxu0 0.0
    %1239 = vmatmul.mubr.f32.gmra.mxu0 %v1094
    %v1240 = vpop.f32.mrf.mxu0
    %v1241 = vadd.f32 0.0, %v1240
    %v1242 = vpop.f32.mrf.mxu0
    %1243 = vdwg.mxu0
    %v1244 = vadd.f32 %v1091, %v1241
    %v1245 = vadd.f32 %v1244, %v514
    %v1246 = vxor.u32 %v1245, 2147483648
    %v1247 = vmul.f32 %v1246, 1.442695
    %v1248 = vpow.pop %v1247
    %v1249 = vadd.f32 %v1248, 1.0
    %v1250 = vrcp.pop %v1249
    %v1251 = vmul.f32 1.0, %v1250
    %1252 = vmatprep.subr.mxu0 0.0
    %1253 = vmatpush1.msra.mxu0 0.0
    %1254 = vmatprep.subr.mxu0 0.0
    %1255 = vmatpush1.msra.mxu0 0.0
    %1256 = vmatprep.subr.mxu0 0.0
    %1257 = vmatpush1.msra.mxu0 0.0
    %1258 = vmatprep.subr.mxu0 0.0
    %1259 = vmatpush1.msra.mxu0 0.0
    %1260 = vmatprep.subr.mxu0 0.0
    %1261 = vmatpush1.msra.mxu0 0.0
    %1262 = vmatprep.subr.mxu0 0.0
    %1263 = vmatpush1.msra.mxu0 0.0
    %1264 = vmatprep.subr.mxu0 0.0
    %1265 = vmatpush1.msra.mxu0 0.0
    %1266 = vmatprep.subr.mxu0 0.0
    %1267 = vmatpush1.msra.mxu0 0.0
    %1268 = vmatprep.subr.mxu0 0.0
    %1269 = vmatpush1.msra.mxu0 0.0
    %1270 = vmatprep.subr.mxu0 0.0
    %1271 = vmatpush1.msra.mxu0 0.0
    %1272 = vmatprep.subr.mxu0 0.0
    %1273 = vmatpush1.msra.mxu0 0.0
    %1274 = vmatprep.subr.mxu0 0.0
    %1275 = vmatpush1.msra.mxu0 0.0
    %1276 = vmatprep.subr.mxu0 0.0
    %1277 = vmatpush1.msra.mxu0 %v343
    %1278 = vmatprep.subr.mxu0 0.0
    %1279 = vmatpush1.msra.mxu0 %v342
    %1280 = vmatprep.subr.mxu0 0.0
    %1281 = vmatpush1.msra.mxu0 %v341
    %1282 = vmatprep.subr.mxu0 0.0
    %1283 = vmatpush1.msra.mxu0 %v340
    %1284 = vmatprep.subr.mxu0 0.0
    %1285 = vmatpush2.msra.mxu0 0.0
    %1286 = vmatprep.subr.mxu0 0.0
    %1287 = vmatpush2.msra.mxu0 0.0
    %1288 = vmatprep.subr.mxu0 0.0
    %1289 = vmatpush2.msra.mxu0 0.0
    %1290 = vmatprep.subr.mxu0 0.0
    %1291 = vmatpush2.msra.mxu0 0.0
    %1292 = vmatprep.subr.mxu0 0.0
    %1293 = vmatpush2.msra.mxu0 0.0
    %1294 = vmatprep.subr.mxu0 0.0
    %1295 = vmatpush2.msra.mxu0 0.0
    %1296 = vmatprep.subr.mxu0 0.0
    %1297 = vmatpush2.msra.mxu0 0.0
    %1298 = vmatprep.subr.mxu0 0.0
    %1299 = vmatpush2.msra.mxu0 0.0
    %1300 = vmatprep.subr.mxu0 0.0
    %1301 = vmatpush2.msra.mxu0 0.0
    %1302 = vmatprep.subr.mxu0 0.0
    %1303 = vmatpush2.msra.mxu0 0.0
    %1304 = vmatprep.subr.mxu0 0.0
    %1305 = vmatpush2.msra.mxu0 0.0
    %1306 = vmatprep.subr.mxu0 0.0
    %1307 = vmatpush2.msra.mxu0 0.0
    %1308 = vmatprep.subr.mxu0 0.0
    %1309 = vmatpush2.msra.mxu0 0.0
    %1310 = vmatprep.subr.mxu0 0.0
    %1311 = vmatpush2.msra.mxu0 0.0
    %1312 = vmatprep.subr.mxu0 0.0
    %1313 = vmatpush2.msra.mxu0 0.0
    %1314 = vmatprep.subr.mxu0 0.0
    %1315 = vmatpush2.msra.mxu0 0.0
    %1316 = vmatprep.mubr.f32.mxu0 0.0
    %1317 = vmatmul.mubr.f32.gmra.mxu0 %v1094
    %v1318 = vpop.f32.mrf.mxu0
    %v1319 = vadd.f32 %v527, %v1318
    %v1320 = vpop.f32.mrf.mxu0
    %1321 = vdwg.mxu0
    %v1322 = vmul.f32 %v1173, %v1319
    %v1323 = vadd.f32 %v1092, %v1322
    %v1324 = vtanh.pop %v1323
    %v1325 = vsub.f32 1.0, %v1251
    %v1326 = vmul.f32 %v1325, %v1324
    %v1327 = vmul.f32 %v1251, %v1087
    %v1328 = vadd.f32 %v1326, %v1327
    %s1329 = scalar_lea.vmem [#allocation6], 6
    %1330 = vst.msk [vmem:[%s1329] sm:$0x3] %vm606, %v1328
    %v1331 = vld [vmem:[#allocation2 + $0x8] sm:$0x3]
    %v1332 = vld [vmem:[%s239 + $0x8] sm:$0x3]
    %v1333 = vld [vmem:[%s327 + $0x8] sm:$0x3]
    %v1335 = vsel %vm151, %v1328, 0
    %1337 = vmatprep.subr.mxu0 0.0
    %1338 = vmatpush1.msra.mxu0 0.0
    %1339 = vmatprep.subr.mxu0 0.0
    %1340 = vmatpush1.msra.mxu0 0.0
    %1341 = vmatprep.subr.mxu0 0.0
    %1342 = vmatpush1.msra.mxu0 0.0
    %1343 = vmatprep.subr.mxu0 0.0
    %1344 = vmatpush1.msra.mxu0 0.0
    %1345 = vmatprep.subr.mxu0 0.0
    %1346 = vmatpush1.msra.mxu0 0.0
    %1347 = vmatprep.subr.mxu0 0.0
    %1348 = vmatpush1.msra.mxu0 0.0
    %1349 = vmatprep.subr.mxu0 0.0
    %1350 = vmatpush1.msra.mxu0 0.0
    %1351 = vmatprep.subr.mxu0 0.0
    %1352 = vmatpush1.msra.mxu0 0.0
    %1353 = vmatprep.subr.mxu0 0.0
    %1354 = vmatpush1.msra.mxu0 0.0
    %1355 = vmatprep.subr.mxu0 0.0
    %1356 = vmatpush1.msra.mxu0 0.0
    %1357 = vmatprep.subr.mxu0 0.0
    %1358 = vmatpush1.msra.mxu0 0.0
    %1359 = vmatprep.subr.mxu0 0.0
    %1360 = vmatpush1.msra.mxu0 0.0
    %1361 = vmatprep.subr.mxu0 0.0
    %1362 = vmatpush1.msra.mxu0 %v333
    %1363 = vmatprep.subr.mxu0 0.0
    %1364 = vmatpush1.msra.mxu0 %v332
    %1365 = vmatprep.subr.mxu0 0.0
    %1366 = vmatpush1.msra.mxu0 %v331
    %1367 = vmatprep.subr.mxu0 0.0
    %1368 = vmatpush1.msra.mxu0 %v330
    %1369 = vmatprep.subr.mxu0 0.0
    %1370 = vmatpush2.msra.mxu0 0.0
    %1371 = vmatprep.subr.mxu0 0.0
    %1372 = vmatpush2.msra.mxu0 0.0
    %1373 = vmatprep.subr.mxu0 0.0
    %1374 = vmatpush2.msra.mxu0 0.0
    %1375 = vmatprep.subr.mxu0 0.0
    %1376 = vmatpush2.msra.mxu0 0.0
    %1377 = vmatprep.subr.mxu0 0.0
    %1378 = vmatpush2.msra.mxu0 0.0
    %1379 = vmatprep.subr.mxu0 0.0
    %1380 = vmatpush2.msra.mxu0 0.0
    %1381 = vmatprep.subr.mxu0 0.0
    %1382 = vmatpush2.msra.mxu0 0.0
    %1383 = vmatprep.subr.mxu0 0.0
    %1384 = vmatpush2.msra.mxu0 0.0
    %1385 = vmatprep.subr.mxu0 0.0
    %1386 = vmatpush2.msra.mxu0 0.0
    %1387 = vmatprep.subr.mxu0 0.0
    %1388 = vmatpush2.msra.mxu0 0.0
    %1389 = vmatprep.subr.mxu0 0.0
    %1390 = vmatpush2.msra.mxu0 0.0
    %1391 = vmatprep.subr.mxu0 0.0
    %1392 = vmatpush2.msra.mxu0 0.0
    %1393 = vmatprep.subr.mxu0 0.0
    %1394 = vmatpush2.msra.mxu0 0.0
    %1395 = vmatprep.subr.mxu0 0.0
    %1396 = vmatpush2.msra.mxu0 0.0
    %1397 = vmatprep.subr.mxu0 0.0
    %1398 = vmatpush2.msra.mxu0 0.0
    %1399 = vmatprep.subr.mxu0 0.0
    %1400 = vmatpush2.msra.mxu0 0.0
    %1401 = vmatprep.mubr.f32.mxu0 0.0
    %1402 = vmatmul.mubr.f32.gmra.mxu0 %v1335
    %v1403 = vpop.f32.mrf.mxu0
    %v1404 = vadd.f32 0.0, %v1403
    %v1405 = vpop.f32.mrf.mxu0
    %1406 = vdwg.mxu0
    %v1407 = vadd.f32 %v1331, %v1404
    %v1408 = vadd.f32 %v1407, %v430
    %v1409 = vxor.u32 %v1408, 2147483648
    %v1410 = vmul.f32 %v1409, 1.442695
    %v1411 = vpow.pop %v1410
    %v1412 = vadd.f32 %v1411, 1.0
    %v1413 = vrcp.pop %v1412
    %v1414 = vmul.f32 1.0, %v1413
    %1415 = vmatprep.subr.mxu0 0.0
    %1416 = vmatpush1.msra.mxu0 0.0
    %1417 = vmatprep.subr.mxu0 0.0
    %1418 = vmatpush1.msra.mxu0 0.0
    %1419 = vmatprep.subr.mxu0 0.0
    %1420 = vmatpush1.msra.mxu0 0.0
    %1421 = vmatprep.subr.mxu0 0.0
    %1422 = vmatpush1.msra.mxu0 0.0
    %1423 = vmatprep.subr.mxu0 0.0
    %1424 = vmatpush1.msra.mxu0 0.0
    %1425 = vmatprep.subr.mxu0 0.0
    %1426 = vmatpush1.msra.mxu0 0.0
    %1427 = vmatprep.subr.mxu0 0.0
    %1428 = vmatpush1.msra.mxu0 0.0
    %1429 = vmatprep.subr.mxu0 0.0
    %1430 = vmatpush1.msra.mxu0 0.0
    %1431 = vmatprep.subr.mxu0 0.0
    %1432 = vmatpush1.msra.mxu0 0.0
    %1433 = vmatprep.subr.mxu0 0.0
    %1434 = vmatpush1.msra.mxu0 0.0
    %1435 = vmatprep.subr.mxu0 0.0
    %1436 = vmatpush1.msra.mxu0 0.0
    %1437 = vmatprep.subr.mxu0 0.0
    %1438 = vmatpush1.msra.mxu0 0.0
    %1439 = vmatprep.subr.mxu0 0.0
    %1440 = vmatpush1.msra.mxu0 %v338
    %1441 = vmatprep.subr.mxu0 0.0
    %1442 = vmatpush1.msra.mxu0 %v337
    %1443 = vmatprep.subr.mxu0 0.0
    %1444 = vmatpush1.msra.mxu0 %v336
    %1445 = vmatprep.subr.mxu0 0.0
    %1446 = vmatpush1.msra.mxu0 %v335
    %1447 = vmatprep.subr.mxu0 0.0
    %1448 = vmatpush2.msra.mxu0 0.0
    %1449 = vmatprep.subr.mxu0 0.0
    %1450 = vmatpush2.msra.mxu0 0.0
    %1451 = vmatprep.subr.mxu0 0.0
    %1452 = vmatpush2.msra.mxu0 0.0
    %1453 = vmatprep.subr.mxu0 0.0
    %1454 = vmatpush2.msra.mxu0 0.0
    %1455 = vmatprep.subr.mxu0 0.0
    %1456 = vmatpush2.msra.mxu0 0.0
    %1457 = vmatprep.subr.mxu0 0.0
    %1458 = vmatpush2.msra.mxu0 0.0
    %1459 = vmatprep.subr.mxu0 0.0
    %1460 = vmatpush2.msra.mxu0 0.0
    %1461 = vmatprep.subr.mxu0 0.0
    %1462 = vmatpush2.msra.mxu0 0.0
    %1463 = vmatprep.subr.mxu0 0.0
    %1464 = vmatpush2.msra.mxu0 0.0
    %1465 = vmatprep.subr.mxu0 0.0
    %1466 = vmatpush2.msra.mxu0 0.0
    %1467 = vmatprep.subr.mxu0 0.0
    %1468 = vmatpush2.msra.mxu0 0.0
    %1469 = vmatprep.subr.mxu0 0.0
    %1470 = vmatpush2.msra.mxu0 0.0
    %1471 = vmatprep.subr.mxu0 0.0
    %1472 = vmatpush2.msra.mxu0 0.0
    %1473 = vmatprep.subr.mxu0 0.0
    %1474 = vmatpush2.msra.mxu0 0.0
    %1475 = vmatprep.subr.mxu0 0.0
    %1476 = vmatpush2.msra.mxu0 0.0
    %1477 = vmatprep.subr.mxu0 0.0
    %1478 = vmatpush2.msra.mxu0 0.0
    %1479 = vmatprep.mubr.f32.mxu0 0.0
    %1480 = vmatmul.mubr.f32.gmra.mxu0 %v1335
    %v1481 = vpop.f32.mrf.mxu0
    %v1482 = vadd.f32 0.0, %v1481
    %v1483 = vpop.f32.mrf.mxu0
    %1484 = vdwg.mxu0
    %v1485 = vadd.f32 %v1332, %v1482
    %v1486 = vadd.f32 %v1485, %v514
    %v1487 = vxor.u32 %v1486, 2147483648
    %v1488 = vmul.f32 %v1487, 1.442695
    %v1489 = vpow.pop %v1488
    %v1490 = vadd.f32 %v1489, 1.0
    %v1491 = vrcp.pop %v1490
    %v1492 = vmul.f32 1.0, %v1491
    %1493 = vmatprep.subr.mxu0 0.0
    %1494 = vmatpush1.msra.mxu0 0.0
    %1495 = vmatprep.subr.mxu0 0.0
    %1496 = vmatpush1.msra.mxu0 0.0
    %1497 = vmatprep.subr.mxu0 0.0
    %1498 = vmatpush1.msra.mxu0 0.0
    %1499 = vmatprep.subr.mxu0 0.0
    %1500 = vmatpush1.msra.mxu0 0.0
    %1501 = vmatprep.subr.mxu0 0.0
    %1502 = vmatpush1.msra.mxu0 0.0
    %1503 = vmatprep.subr.mxu0 0.0
    %1504 = vmatpush1.msra.mxu0 0.0
    %1505 = vmatprep.subr.mxu0 0.0
    %1506 = vmatpush1.msra.mxu0 0.0
    %1507 = vmatprep.subr.mxu0 0.0
    %1508 = vmatpush1.msra.mxu0 0.0
    %1509 = vmatprep.subr.mxu0 0.0
    %1510 = vmatpush1.msra.mxu0 0.0
    %1511 = vmatprep.subr.mxu0 0.0
    %1512 = vmatpush1.msra.mxu0 0.0
    %1513 = vmatprep.subr.mxu0 0.0
    %1514 = vmatpush1.msra.mxu0 0.0
    %1515 = vmatprep.subr.mxu0 0.0
    %1516 = vmatpush1.msra.mxu0 0.0
    %1517 = vmatprep.subr.mxu0 0.0
    %1518 = vmatpush1.msra.mxu0 %v343
    %1519 = vmatprep.subr.mxu0 0.0
    %1520 = vmatpush1.msra.mxu0 %v342
    %1521 = vmatprep.subr.mxu0 0.0
    %1522 = vmatpush1.msra.mxu0 %v341
    %1523 = vmatprep.subr.mxu0 0.0
    %1524 = vmatpush1.msra.mxu0 %v340
    %1525 = vmatprep.subr.mxu0 0.0
    %1526 = vmatpush2.msra.mxu0 0.0
    %1527 = vmatprep.subr.mxu0 0.0
    %1528 = vmatpush2.msra.mxu0 0.0
    %1529 = vmatprep.subr.mxu0 0.0
    %1530 = vmatpush2.msra.mxu0 0.0
    %1531 = vmatprep.subr.mxu0 0.0
    %1532 = vmatpush2.msra.mxu0 0.0
    %1533 = vmatprep.subr.mxu0 0.0
    %1534 = vmatpush2.msra.mxu0 0.0
    %1535 = vmatprep.subr.mxu0 0.0
    %1536 = vmatpush2.msra.mxu0 0.0
    %1537 = vmatprep.subr.mxu0 0.0
    %1538 = vmatpush2.msra.mxu0 0.0
    %1539 = vmatprep.subr.mxu0 0.0
    %1540 = vmatpush2.msra.mxu0 0.0
    %1541 = vmatprep.subr.mxu0 0.0
    %1542 = vmatpush2.msra.mxu0 0.0
    %1543 = vmatprep.subr.mxu0 0.0
    %1544 = vmatpush2.msra.mxu0 0.0
    %1545 = vmatprep.subr.mxu0 0.0
    %1546 = vmatpush2.msra.mxu0 0.0
    %1547 = vmatprep.subr.mxu0 0.0
    %1548 = vmatpush2.msra.mxu0 0.0
    %1549 = vmatprep.subr.mxu0 0.0
    %1550 = vmatpush2.msra.mxu0 0.0
    %1551 = vmatprep.subr.mxu0 0.0
    %1552 = vmatpush2.msra.mxu0 0.0
    %1553 = vmatprep.subr.mxu0 0.0
    %1554 = vmatpush2.msra.mxu0 0.0
    %1555 = vmatprep.subr.mxu0 0.0
    %1556 = vmatpush2.msra.mxu0 0.0
    %1557 = vmatprep.mubr.f32.mxu0 0.0
    %1558 = vmatmul.mubr.f32.gmra.mxu0 %v1335
    %v1559 = vpop.f32.mrf.mxu0
    %v1560 = vadd.f32 %v527, %v1559
    %v1561 = vpop.f32.mrf.mxu0
    %1562 = vdwg.mxu0
    %v1563 = vmul.f32 %v1414, %v1560
    %v1564 = vadd.f32 %v1333, %v1563
    %v1565 = vtanh.pop %v1564
    %v1566 = vsub.f32 1.0, %v1492
    %v1567 = vmul.f32 %v1566, %v1565
    %v1568 = vmul.f32 %v1492, %v1328
    %v1569 = vadd.f32 %v1567, %v1568
    %s1570 = scalar_lea.vmem [#allocation6], 8
    %1571 = vst.msk [vmem:[%s1570] sm:$0x3] %vm606, %v1569
    %v1572 = vld [vmem:[#allocation2 + $0xa] sm:$0x3]
    %v1573 = vld [vmem:[%s239 + $0xa] sm:$0x3]
    %v1574 = vld [vmem:[%s327 + $0xa] sm:$0x3]
    %v1576 = vsel %vm151, %v1569, 0
    %1578 = vmatprep.subr.mxu0 0.0
    %1579 = vmatpush1.msra.mxu0 0.0
    %1580 = vmatprep.subr.mxu0 0.0
    %1581 = vmatpush1.msra.mxu0 0.0
    %1582 = vmatprep.subr.mxu0 0.0
    %1583 = vmatpush1.msra.mxu0 0.0
    %1584 = vmatprep.subr.mxu0 0.0
    %1585 = vmatpush1.msra.mxu0 0.0
    %1586 = vmatprep.subr.mxu0 0.0
    %1587 = vmatpush1.msra.mxu0 0.0
    %1588 = vmatprep.subr.mxu0 0.0
    %1589 = vmatpush1.msra.mxu0 0.0
    %1590 = vmatprep.subr.mxu0 0.0
    %1591 = vmatpush1.msra.mxu0 0.0
    %1592 = vmatprep.subr.mxu0 0.0
    %1593 = vmatpush1.msra.mxu0 0.0
    %1594 = vmatprep.subr.mxu0 0.0
    %1595 = vmatpush1.msra.mxu0 0.0
    %1596 = vmatprep.subr.mxu0 0.0
    %1597 = vmatpush1.msra.mxu0 0.0
    %1598 = vmatprep.subr.mxu0 0.0
    %1599 = vmatpush1.msra.mxu0 0.0
    %1600 = vmatprep.subr.mxu0 0.0
    %1601 = vmatpush1.msra.mxu0 0.0
    %1602 = vmatprep.subr.mxu0 0.0
    %1603 = vmatpush1.msra.mxu0 %v333
    %1604 = vmatprep.subr.mxu0 0.0
    %1605 = vmatpush1.msra.mxu0 %v332
    %1606 = vmatprep.subr.mxu0 0.0
    %1607 = vmatpush1.msra.mxu0 %v331
    %1608 = vmatprep.subr.mxu0 0.0
    %1609 = vmatpush1.msra.mxu0 %v330
    %1610 = vmatprep.subr.mxu0 0.0
    %1611 = vmatpush2.msra.mxu0 0.0
    %1612 = vmatprep.subr.mxu0 0.0
    %1613 = vmatpush2.msra.mxu0 0.0
    %1614 = vmatprep.subr.mxu0 0.0
    %1615 = vmatpush2.msra.mxu0 0.0
    %1616 = vmatprep.subr.mxu0 0.0
    %1617 = vmatpush2.msra.mxu0 0.0
    %1618 = vmatprep.subr.mxu0 0.0
    %1619 = vmatpush2.msra.mxu0 0.0
    %1620 = vmatprep.subr.mxu0 0.0
    %1621 = vmatpush2.msra.mxu0 0.0
    %1622 = vmatprep.subr.mxu0 0.0
    %1623 = vmatpush2.msra.mxu0 0.0
    %1624 = vmatprep.subr.mxu0 0.0
    %1625 = vmatpush2.msra.mxu0 0.0
    %1626 = vmatprep.subr.mxu0 0.0
    %1627 = vmatpush2.msra.mxu0 0.0
    %1628 = vmatprep.subr.mxu0 0.0
    %1629 = vmatpush2.msra.mxu0 0.0
    %1630 = vmatprep.subr.mxu0 0.0
    %1631 = vmatpush2.msra.mxu0 0.0
    %1632 = vmatprep.subr.mxu0 0.0
    %1633 = vmatpush2.msra.mxu0 0.0
    %1634 = vmatprep.subr.mxu0 0.0
    %1635 = vmatpush2.msra.mxu0 0.0
    %1636 = vmatprep.subr.mxu0 0.0
    %1637 = vmatpush2.msra.mxu0 0.0
    %1638 = vmatprep.subr.mxu0 0.0
    %1639 = vmatpush2.msra.mxu0 0.0
    %1640 = vmatprep.subr.mxu0 0.0
    %1641 = vmatpush2.msra.mxu0 0.0
    %1642 = vmatprep.mubr.f32.mxu0 0.0
    %1643 = vmatmul.mubr.f32.gmra.mxu0 %v1576
    %v1644 = vpop.f32.mrf.mxu0
    %v1645 = vadd.f32 0.0, %v1644
    %v1646 = vpop.f32.mrf.mxu0
    %1647 = vdwg.mxu0
    %v1648 = vadd.f32 %v1572, %v1645
    %v1649 = vadd.f32 %v1648, %v430
    %v1650 = vxor.u32 %v1649, 2147483648
    %v1651 = vmul.f32 %v1650, 1.442695
    %v1652 = vpow.pop %v1651
    %v1653 = vadd.f32 %v1652, 1.0
    %v1654 = vrcp.pop %v1653
    %v1655 = vmul.f32 1.0, %v1654
    %1656 = vmatprep.subr.mxu0 0.0
    %1657 = vmatpush1.msra.mxu0 0.0
    %1658 = vmatprep.subr.mxu0 0.0
    %1659 = vmatpush1.msra.mxu0 0.0
    %1660 = vmatprep.subr.mxu0 0.0
    %1661 = vmatpush1.msra.mxu0 0.0
    %1662 = vmatprep.subr.mxu0 0.0
    %1663 = vmatpush1.msra.mxu0 0.0
    %1664 = vmatprep.subr.mxu0 0.0
    %1665 = vmatpush1.msra.mxu0 0.0
    %1666 = vmatprep.subr.mxu0 0.0
    %1667 = vmatpush1.msra.mxu0 0.0
    %1668 = vmatprep.subr.mxu0 0.0
    %1669 = vmatpush1.msra.mxu0 0.0
    %1670 = vmatprep.subr.mxu0 0.0
    %1671 = vmatpush1.msra.mxu0 0.0
    %1672 = vmatprep.subr.mxu0 0.0
    %1673 = vmatpush1.msra.mxu0 0.0
    %1674 = vmatprep.subr.mxu0 0.0
    %1675 = vmatpush1.msra.mxu0 0.0
    %1676 = vmatprep.subr.mxu0 0.0
    %1677 = vmatpush1.msra.mxu0 0.0
    %1678 = vmatprep.subr.mxu0 0.0
    %1679 = vmatpush1.msra.mxu0 0.0
    %1680 = vmatprep.subr.mxu0 0.0
    %1681 = vmatpush1.msra.mxu0 %v338
    %1682 = vmatprep.subr.mxu0 0.0
    %1683 = vmatpush1.msra.mxu0 %v337
    %1684 = vmatprep.subr.mxu0 0.0
    %1685 = vmatpush1.msra.mxu0 %v336
    %1686 = vmatprep.subr.mxu0 0.0
    %1687 = vmatpush1.msra.mxu0 %v335
    %1688 = vmatprep.subr.mxu0 0.0
    %1689 = vmatpush2.msra.mxu0 0.0
    %1690 = vmatprep.subr.mxu0 0.0
    %1691 = vmatpush2.msra.mxu0 0.0
    %1692 = vmatprep.subr.mxu0 0.0
    %1693 = vmatpush2.msra.mxu0 0.0
    %1694 = vmatprep.subr.mxu0 0.0
    %1695 = vmatpush2.msra.mxu0 0.0
    %1696 = vmatprep.subr.mxu0 0.0
    %1697 = vmatpush2.msra.mxu0 0.0
    %1698 = vmatprep.subr.mxu0 0.0
    %1699 = vmatpush2.msra.mxu0 0.0
    %1700 = vmatprep.subr.mxu0 0.0
    %1701 = vmatpush2.msra.mxu0 0.0
    %1702 = vmatprep.subr.mxu0 0.0
    %1703 = vmatpush2.msra.mxu0 0.0
    %1704 = vmatprep.subr.mxu0 0.0
    %1705 = vmatpush2.msra.mxu0 0.0
    %1706 = vmatprep.subr.mxu0 0.0
    %1707 = vmatpush2.msra.mxu0 0.0
    %1708 = vmatprep.subr.mxu0 0.0
    %1709 = vmatpush2.msra.mxu0 0.0
    %1710 = vmatprep.subr.mxu0 0.0
    %1711 = vmatpush2.msra.mxu0 0.0
    %1712 = vmatprep.subr.mxu0 0.0
    %1713 = vmatpush2.msra.mxu0 0.0
    %1714 = vmatprep.subr.mxu0 0.0
    %1715 = vmatpush2.msra.mxu0 0.0
    %1716 = vmatprep.subr.mxu0 0.0
    %1717 = vmatpush2.msra.mxu0 0.0
    %1718 = vmatprep.subr.mxu0 0.0
    %1719 = vmatpush2.msra.mxu0 0.0
    %1720 = vmatprep.mubr.f32.mxu0 0.0
    %1721 = vmatmul.mubr.f32.gmra.mxu0 %v1576
    %v1722 = vpop.f32.mrf.mxu0
    %v1723 = vadd.f32 0.0, %v1722
    %v1724 = vpop.f32.mrf.mxu0
    %1725 = vdwg.mxu0
    %v1726 = vadd.f32 %v1573, %v1723
    %v1727 = vadd.f32 %v1726, %v514
    %v1728 = vxor.u32 %v1727, 2147483648
    %v1729 = vmul.f32 %v1728, 1.442695
    %v1730 = vpow.pop %v1729
    %v1731 = vadd.f32 %v1730, 1.0
    %v1732 = vrcp.pop %v1731
    %v1733 = vmul.f32 1.0, %v1732
    %1734 = vmatprep.subr.mxu0 0.0
    %1735 = vmatpush1.msra.mxu0 0.0
    %1736 = vmatprep.subr.mxu0 0.0
    %1737 = vmatpush1.msra.mxu0 0.0
    %1738 = vmatprep.subr.mxu0 0.0
    %1739 = vmatpush1.msra.mxu0 0.0
    %1740 = vmatprep.subr.mxu0 0.0
    %1741 = vmatpush1.msra.mxu0 0.0
    %1742 = vmatprep.subr.mxu0 0.0
    %1743 = vmatpush1.msra.mxu0 0.0
    %1744 = vmatprep.subr.mxu0 0.0
    %1745 = vmatpush1.msra.mxu0 0.0
    %1746 = vmatprep.subr.mxu0 0.0
    %1747 = vmatpush1.msra.mxu0 0.0
    %1748 = vmatprep.subr.mxu0 0.0
    %1749 = vmatpush1.msra.mxu0 0.0
    %1750 = vmatprep.subr.mxu0 0.0
    %1751 = vmatpush1.msra.mxu0 0.0
    %1752 = vmatprep.subr.mxu0 0.0
    %1753 = vmatpush1.msra.mxu0 0.0
    %1754 = vmatprep.subr.mxu0 0.0
    %1755 = vmatpush1.msra.mxu0 0.0
    %1756 = vmatprep.subr.mxu0 0.0
    %1757 = vmatpush1.msra.mxu0 0.0
    %1758 = vmatprep.subr.mxu0 0.0
    %1759 = vmatpush1.msra.mxu0 %v343
    %1760 = vmatprep.subr.mxu0 0.0
    %1761 = vmatpush1.msra.mxu0 %v342
    %1762 = vmatprep.subr.mxu0 0.0
    %1763 = vmatpush1.msra.mxu0 %v341
    %1764 = vmatprep.subr.mxu0 0.0
    %1765 = vmatpush1.msra.mxu0 %v340
    %1766 = vmatprep.subr.mxu0 0.0
    %1767 = vmatpush2.msra.mxu0 0.0
    %1768 = vmatprep.subr.mxu0 0.0
    %1769 = vmatpush2.msra.mxu0 0.0
    %1770 = vmatprep.subr.mxu0 0.0
    %1771 = vmatpush2.msra.mxu0 0.0
    %1772 = vmatprep.subr.mxu0 0.0
    %1773 = vmatpush2.msra.mxu0 0.0
    %1774 = vmatprep.subr.mxu0 0.0
    %1775 = vmatpush2.msra.mxu0 0.0
    %1776 = vmatprep.subr.mxu0 0.0
    %1777 = vmatpush2.msra.mxu0 0.0
    %1778 = vmatprep.subr.mxu0 0.0
    %1779 = vmatpush2.msra.mxu0 0.0
    %1780 = vmatprep.subr.mxu0 0.0
    %1781 = vmatpush2.msra.mxu0 0.0
    %1782 = vmatprep.subr.mxu0 0.0
    %1783 = vmatpush2.msra.mxu0 0.0
    %1784 = vmatprep.subr.mxu0 0.0
    %1785 = vmatpush2.msra.mxu0 0.0
    %1786 = vmatprep.subr.mxu0 0.0
    %1787 = vmatpush2.msra.mxu0 0.0
    %1788 = vmatprep.subr.mxu0 0.0
    %1789 = vmatpush2.msra.mxu0 0.0
    %1790 = vmatprep.subr.mxu0 0.0
    %1791 = vmatpush2.msra.mxu0 0.0
    %1792 = vmatprep.subr.mxu0 0.0
    %1793 = vmatpush2.msra.mxu0 0.0
    %1794 = vmatprep.subr.mxu0 0.0
    %1795 = vmatpush2.msra.mxu0 0.0
    %1796 = vmatprep.subr.mxu0 0.0
    %1797 = vmatpush2.msra.mxu0 0.0
    %1798 = vmatprep.mubr.f32.mxu0 0.0
    %1799 = vmatmul.mubr.f32.gmra.mxu0 %v1576
    %v1800 = vpop.f32.mrf.mxu0
    %v1801 = vadd.f32 %v527, %v1800
    %v1802 = vpop.f32.mrf.mxu0
    %1803 = vdwg.mxu0
    %v1804 = vmul.f32 %v1655, %v1801
    %v1805 = vadd.f32 %v1574, %v1804
    %v1806 = vtanh.pop %v1805
    %v1807 = vsub.f32 1.0, %v1733
    %v1808 = vmul.f32 %v1807, %v1806
    %v1809 = vmul.f32 %v1733, %v1569
    %v1810 = vadd.f32 %v1808, %v1809
    %s1811 = scalar_lea.vmem [#allocation6], 10
    %1812 = vst.msk [vmem:[%s1811] sm:$0x3] %vm606, %v1810
    %v1813 = vld [vmem:[#allocation2 + $0xc] sm:$0x3]
    %v1814 = vld [vmem:[%s239 + $0xc] sm:$0x3]
    %v1815 = vld [vmem:[%s327 + $0xc] sm:$0x3]
    %v1817 = vsel %vm151, %v1810, 0
    %1819 = vmatprep.subr.mxu0 0.0
    %1820 = vmatpush1.msra.mxu0 0.0
    %1821 = vmatprep.subr.mxu0 0.0
    %1822 = vmatpush1.msra.mxu0 0.0
    %1823 = vmatprep.subr.mxu0 0.0
    %1824 = vmatpush1.msra.mxu0 0.0
    %1825 = vmatprep.subr.mxu0 0.0
    %1826 = vmatpush1.msra.mxu0 0.0
    %1827 = vmatprep.subr.mxu0 0.0
    %1828 = vmatpush1.msra.mxu0 0.0
    %1829 = vmatprep.subr.mxu0 0.0
    %1830 = vmatpush1.msra.mxu0 0.0
    %1831 = vmatprep.subr.mxu0 0.0
    %1832 = vmatpush1.msra.mxu0 0.0
    %1833 = vmatprep.subr.mxu0 0.0
    %1834 = vmatpush1.msra.mxu0 0.0
    %1835 = vmatprep.subr.mxu0 0.0
    %1836 = vmatpush1.msra.mxu0 0.0
    %1837 = vmatprep.subr.mxu0 0.0
    %1838 = vmatpush1.msra.mxu0 0.0
    %1839 = vmatprep.subr.mxu0 0.0
    %1840 = vmatpush1.msra.mxu0 0.0
    %1841 = vmatprep.subr.mxu0 0.0
    %1842 = vmatpush1.msra.mxu0 0.0
    %1843 = vmatprep.subr.mxu0 0.0
    %1844 = vmatpush1.msra.mxu0 %v333
    %1845 = vmatprep.subr.mxu0 0.0
    %1846 = vmatpush1.msra.mxu0 %v332
    %1847 = vmatprep.subr.mxu0 0.0
    %1848 = vmatpush1.msra.mxu0 %v331
    %1849 = vmatprep.subr.mxu0 0.0
    %1850 = vmatpush1.msra.mxu0 %v330
    %1851 = vmatprep.subr.mxu0 0.0
    %1852 = vmatpush2.msra.mxu0 0.0
    %1853 = vmatprep.subr.mxu0 0.0
    %1854 = vmatpush2.msra.mxu0 0.0
    %1855 = vmatprep.subr.mxu0 0.0
    %1856 = vmatpush2.msra.mxu0 0.0
    %1857 = vmatprep.subr.mxu0 0.0
    %1858 = vmatpush2.msra.mxu0 0.0
    %1859 = vmatprep.subr.mxu0 0.0
    %1860 = vmatpush2.msra.mxu0 0.0
    %1861 = vmatprep.subr.mxu0 0.0
    %1862 = vmatpush2.msra.mxu0 0.0
    %1863 = vmatprep.subr.mxu0 0.0
    %1864 = vmatpush2.msra.mxu0 0.0
    %1865 = vmatprep.subr.mxu0 0.0
    %1866 = vmatpush2.msra.mxu0 0.0
    %1867 = vmatprep.subr.mxu0 0.0
    %1868 = vmatpush2.msra.mxu0 0.0
    %1869 = vmatprep.subr.mxu0 0.0
    %1870 = vmatpush2.msra.mxu0 0.0
    %1871 = vmatprep.subr.mxu0 0.0
    %1872 = vmatpush2.msra.mxu0 0.0
    %1873 = vmatprep.subr.mxu0 0.0
    %1874 = vmatpush2.msra.mxu0 0.0
    %1875 = vmatprep.subr.mxu0 0.0
    %1876 = vmatpush2.msra.mxu0 0.0
    %1877 = vmatprep.subr.mxu0 0.0
    %1878 = vmatpush2.msra.mxu0 0.0
    %1879 = vmatprep.subr.mxu0 0.0
    %1880 = vmatpush2.msra.mxu0 0.0
    %1881 = vmatprep.subr.mxu0 0.0
    %1882 = vmatpush2.msra.mxu0 0.0
    %1883 = vmatprep.mubr.f32.mxu0 0.0
    %1884 = vmatmul.mubr.f32.gmra.mxu0 %v1817
    %v1885 = vpop.f32.mrf.mxu0
    %v1886 = vadd.f32 0.0, %v1885
    %v1887 = vpop.f32.mrf.mxu0
    %1888 = vdwg.mxu0
    %v1889 = vadd.f32 %v1813, %v1886
    %v1890 = vadd.f32 %v1889, %v430
    %v1891 = vxor.u32 %v1890, 2147483648
    %v1892 = vmul.f32 %v1891, 1.442695
    %v1893 = vpow.pop %v1892
    %v1894 = vadd.f32 %v1893, 1.0
    %v1895 = vrcp.pop %v1894
    %v1896 = vmul.f32 1.0, %v1895
    %1897 = vmatprep.subr.mxu0 0.0
    %1898 = vmatpush1.msra.mxu0 0.0
    %1899 = vmatprep.subr.mxu0 0.0
    %1900 = vmatpush1.msra.mxu0 0.0
    %1901 = vmatprep.subr.mxu0 0.0
    %1902 = vmatpush1.msra.mxu0 0.0
    %1903 = vmatprep.subr.mxu0 0.0
    %1904 = vmatpush1.msra.mxu0 0.0
    %1905 = vmatprep.subr.mxu0 0.0
    %1906 = vmatpush1.msra.mxu0 0.0
    %1907 = vmatprep.subr.mxu0 0.0
    %1908 = vmatpush1.msra.mxu0 0.0
    %1909 = vmatprep.subr.mxu0 0.0
    %1910 = vmatpush1.msra.mxu0 0.0
    %1911 = vmatprep.subr.mxu0 0.0
    %1912 = vmatpush1.msra.mxu0 0.0
    %1913 = vmatprep.subr.mxu0 0.0
    %1914 = vmatpush1.msra.mxu0 0.0
    %1915 = vmatprep.subr.mxu0 0.0
    %1916 = vmatpush1.msra.mxu0 0.0
    %1917 = vmatprep.subr.mxu0 0.0
    %1918 = vmatpush1.msra.mxu0 0.0
    %1919 = vmatprep.subr.mxu0 0.0
    %1920 = vmatpush1.msra.mxu0 0.0
    %1921 = vmatprep.subr.mxu0 0.0
    %1922 = vmatpush1.msra.mxu0 %v338
    %1923 = vmatprep.subr.mxu0 0.0
    %1924 = vmatpush1.msra.mxu0 %v337
    %1925 = vmatprep.subr.mxu0 0.0
    %1926 = vmatpush1.msra.mxu0 %v336
    %1927 = vmatprep.subr.mxu0 0.0
    %1928 = vmatpush1.msra.mxu0 %v335
    %1929 = vmatprep.subr.mxu0 0.0
    %1930 = vmatpush2.msra.mxu0 0.0
    %1931 = vmatprep.subr.mxu0 0.0
    %1932 = vmatpush2.msra.mxu0 0.0
    %1933 = vmatprep.subr.mxu0 0.0
    %1934 = vmatpush2.msra.mxu0 0.0
    %1935 = vmatprep.subr.mxu0 0.0
    %1936 = vmatpush2.msra.mxu0 0.0
    %1937 = vmatprep.subr.mxu0 0.0
    %1938 = vmatpush2.msra.mxu0 0.0
    %1939 = vmatprep.subr.mxu0 0.0
    %1940 = vmatpush2.msra.mxu0 0.0
    %1941 = vmatprep.subr.mxu0 0.0
    %1942 = vmatpush2.msra.mxu0 0.0
    %1943 = vmatprep.subr.mxu0 0.0
    %1944 = vmatpush2.msra.mxu0 0.0
    %1945 = vmatprep.subr.mxu0 0.0
    %1946 = vmatpush2.msra.mxu0 0.0
    %1947 = vmatprep.subr.mxu0 0.0
    %1948 = vmatpush2.msra.mxu0 0.0
    %1949 = vmatprep.subr.mxu0 0.0
    %1950 = vmatpush2.msra.mxu0 0.0
    %1951 = vmatprep.subr.mxu0 0.0
    %1952 = vmatpush2.msra.mxu0 0.0
    %1953 = vmatprep.subr.mxu0 0.0
    %1954 = vmatpush2.msra.mxu0 0.0
    %1955 = vmatprep.subr.mxu0 0.0
    %1956 = vmatpush2.msra.mxu0 0.0
    %1957 = vmatprep.subr.mxu0 0.0
    %1958 = vmatpush2.msra.mxu0 0.0
    %1959 = vmatprep.subr.mxu0 0.0
    %1960 = vmatpush2.msra.mxu0 0.0
    %1961 = vmatprep.mubr.f32.mxu0 0.0
    %1962 = vmatmul.mubr.f32.gmra.mxu0 %v1817
    %v1963 = vpop.f32.mrf.mxu0
    %v1964 = vadd.f32 0.0, %v1963
    %v1965 = vpop.f32.mrf.mxu0
    %1966 = vdwg.mxu0
    %v1967 = vadd.f32 %v1814, %v1964
    %v1968 = vadd.f32 %v1967, %v514
    %v1969 = vxor.u32 %v1968, 2147483648
    %v1970 = vmul.f32 %v1969, 1.442695
    %v1971 = vpow.pop %v1970
    %v1972 = vadd.f32 %v1971, 1.0
    %v1973 = vrcp.pop %v1972
    %v1974 = vmul.f32 1.0, %v1973
    %1975 = vmatprep.subr.mxu0 0.0
    %1976 = vmatpush1.msra.mxu0 0.0
    %1977 = vmatprep.subr.mxu0 0.0
    %1978 = vmatpush1.msra.mxu0 0.0
    %1979 = vmatprep.subr.mxu0 0.0
    %1980 = vmatpush1.msra.mxu0 0.0
    %1981 = vmatprep.subr.mxu0 0.0
    %1982 = vmatpush1.msra.mxu0 0.0
    %1983 = vmatprep.subr.mxu0 0.0
    %1984 = vmatpush1.msra.mxu0 0.0
    %1985 = vmatprep.subr.mxu0 0.0
    %1986 = vmatpush1.msra.mxu0 0.0
    %1987 = vmatprep.subr.mxu0 0.0
    %1988 = vmatpush1.msra.mxu0 0.0
    %1989 = vmatprep.subr.mxu0 0.0
    %1990 = vmatpush1.msra.mxu0 0.0
    %1991 = vmatprep.subr.mxu0 0.0
    %1992 = vmatpush1.msra.mxu0 0.0
    %1993 = vmatprep.subr.mxu0 0.0
    %1994 = vmatpush1.msra.mxu0 0.0
    %1995 = vmatprep.subr.mxu0 0.0
    %1996 = vmatpush1.msra.mxu0 0.0
    %1997 = vmatprep.subr.mxu0 0.0
    %1998 = vmatpush1.msra.mxu0 0.0
    %1999 = vmatprep.subr.mxu0 0.0
    %2000 = vmatpush1.msra.mxu0 %v343
    %2001 = vmatprep.subr.mxu0 0.0
    %2002 = vmatpush1.msra.mxu0 %v342
    %2003 = vmatprep.subr.mxu0 0.0
    %2004 = vmatpush1.msra.mxu0 %v341
    %2005 = vmatprep.subr.mxu0 0.0
    %2006 = vmatpush1.msra.mxu0 %v340
    %2007 = vmatprep.subr.mxu0 0.0
    %2008 = vmatpush2.msra.mxu0 0.0
    %2009 = vmatprep.subr.mxu0 0.0
    %2010 = vmatpush2.msra.mxu0 0.0
    %2011 = vmatprep.subr.mxu0 0.0
    %2012 = vmatpush2.msra.mxu0 0.0
    %2013 = vmatprep.subr.mxu0 0.0
    %2014 = vmatpush2.msra.mxu0 0.0
    %2015 = vmatprep.subr.mxu0 0.0
    %2016 = vmatpush2.msra.mxu0 0.0
    %2017 = vmatprep.subr.mxu0 0.0
    %2018 = vmatpush2.msra.mxu0 0.0
    %2019 = vmatprep.subr.mxu0 0.0
    %2020 = vmatpush2.msra.mxu0 0.0
    %2021 = vmatprep.subr.mxu0 0.0
    %2022 = vmatpush2.msra.mxu0 0.0
    %2023 = vmatprep.subr.mxu0 0.0
    %2024 = vmatpush2.msra.mxu0 0.0
    %2025 = vmatprep.subr.mxu0 0.0
    %2026 = vmatpush2.msra.mxu0 0.0
    %2027 = vmatprep.subr.mxu0 0.0
    %2028 = vmatpush2.msra.mxu0 0.0
    %2029 = vmatprep.subr.mxu0 0.0
    %2030 = vmatpush2.msra.mxu0 0.0
    %2031 = vmatprep.subr.mxu0 0.0
    %2032 = vmatpush2.msra.mxu0 0.0
    %2033 = vmatprep.subr.mxu0 0.0
    %2034 = vmatpush2.msra.mxu0 0.0
    %2035 = vmatprep.subr.mxu0 0.0
    %2036 = vmatpush2.msra.mxu0 0.0
    %2037 = vmatprep.subr.mxu0 0.0
    %2038 = vmatpush2.msra.mxu0 0.0
    %2039 = vmatprep.mubr.f32.mxu0 0.0
    %2040 = vmatmul.mubr.f32.gmra.mxu0 %v1817
    %v2041 = vpop.f32.mrf.mxu0
    %v2042 = vadd.f32 %v527, %v2041
    %v2043 = vpop.f32.mrf.mxu0
    %2044 = vdwg.mxu0
    %v2045 = vmul.f32 %v1896, %v2042
    %v2046 = vadd.f32 %v1815, %v2045
    %v2047 = vtanh.pop %v2046
    %v2048 = vsub.f32 1.0, %v1974
    %v2049 = vmul.f32 %v2048, %v2047
    %v2050 = vmul.f32 %v1974, %v1810
    %v2051 = vadd.f32 %v2049, %v2050
    %s2052 = scalar_lea.vmem [#allocation6], 12
    %2053 = vst.msk [vmem:[%s2052] sm:$0x3] %vm606, %v2051
    %v2054 = vld [vmem:[#allocation2 + $0xe] sm:$0x3]
    %v2055 = vld [vmem:[%s239 + $0xe] sm:$0x3]
    %v2056 = vld [vmem:[%s327 + $0xe] sm:$0x3]
    %v2058 = vsel %vm151, %v2051, 0
    %2060 = vmatprep.subr.mxu0 0.0
    %2061 = vmatpush1.msra.mxu0 0.0
    %2062 = vmatprep.subr.mxu0 0.0
    %2063 = vmatpush1.msra.mxu0 0.0
    %2064 = vmatprep.subr.mxu0 0.0
    %2065 = vmatpush1.msra.mxu0 0.0
    %2066 = vmatprep.subr.mxu0 0.0
    %2067 = vmatpush1.msra.mxu0 0.0
    %2068 = vmatprep.subr.mxu0 0.0
    %2069 = vmatpush1.msra.mxu0 0.0
    %2070 = vmatprep.subr.mxu0 0.0
    %2071 = vmatpush1.msra.mxu0 0.0
    %2072 = vmatprep.subr.mxu0 0.0
    %2073 = vmatpush1.msra.mxu0 0.0
    %2074 = vmatprep.subr.mxu0 0.0
    %2075 = vmatpush1.msra.mxu0 0.0
    %2076 = vmatprep.subr.mxu0 0.0
    %2077 = vmatpush1.msra.mxu0 0.0
    %2078 = vmatprep.subr.mxu0 0.0
    %2079 = vmatpush1.msra.mxu0 0.0
    %2080 = vmatprep.subr.mxu0 0.0
    %2081 = vmatpush1.msra.mxu0 0.0
    %2082 = vmatprep.subr.mxu0 0.0
    %2083 = vmatpush1.msra.mxu0 0.0
    %2084 = vmatprep.subr.mxu0 0.0
    %2085 = vmatpush1.msra.mxu0 %v333
    %2086 = vmatprep.subr.mxu0 0.0
    %2087 = vmatpush1.msra.mxu0 %v332
    %2088 = vmatprep.subr.mxu0 0.0
    %2089 = vmatpush1.msra.mxu0 %v331
    %2090 = vmatprep.subr.mxu0 0.0
    %2091 = vmatpush1.msra.mxu0 %v330
    %2092 = vmatprep.subr.mxu0 0.0
    %2093 = vmatpush2.msra.mxu0 0.0
    %2094 = vmatprep.subr.mxu0 0.0
    %2095 = vmatpush2.msra.mxu0 0.0
    %2096 = vmatprep.subr.mxu0 0.0
    %2097 = vmatpush2.msra.mxu0 0.0
    %2098 = vmatprep.subr.mxu0 0.0
    %2099 = vmatpush2.msra.mxu0 0.0
    %2100 = vmatprep.subr.mxu0 0.0
    %2101 = vmatpush2.msra.mxu0 0.0
    %2102 = vmatprep.subr.mxu0 0.0
    %2103 = vmatpush2.msra.mxu0 0.0
    %2104 = vmatprep.subr.mxu0 0.0
    %2105 = vmatpush2.msra.mxu0 0.0
    %2106 = vmatprep.subr.mxu0 0.0
    %2107 = vmatpush2.msra.mxu0 0.0
    %2108 = vmatprep.subr.mxu0 0.0
    %2109 = vmatpush2.msra.mxu0 0.0
    %2110 = vmatprep.subr.mxu0 0.0
    %2111 = vmatpush2.msra.mxu0 0.0
    %2112 = vmatprep.subr.mxu0 0.0
    %2113 = vmatpush2.msra.mxu0 0.0
    %2114 = vmatprep.subr.mxu0 0.0
    %2115 = vmatpush2.msra.mxu0 0.0
    %2116 = vmatprep.subr.mxu0 0.0
    %2117 = vmatpush2.msra.mxu0 0.0
    %2118 = vmatprep.subr.mxu0 0.0
    %2119 = vmatpush2.msra.mxu0 0.0
    %2120 = vmatprep.subr.mxu0 0.0
    %2121 = vmatpush2.msra.mxu0 0.0
    %2122 = vmatprep.subr.mxu0 0.0
    %2123 = vmatpush2.msra.mxu0 0.0
    %2124 = vmatprep.mubr.f32.mxu0 0.0
    %2125 = vmatmul.mubr.f32.gmra.mxu0 %v2058
    %v2126 = vpop.f32.mrf.mxu0
    %v2127 = vadd.f32 0.0, %v2126
    %v2128 = vpop.f32.mrf.mxu0
    %2129 = vdwg.mxu0
    %v2130 = vadd.f32 %v2054, %v2127
    %v2131 = vadd.f32 %v2130, %v430
    %v2132 = vxor.u32 %v2131, 2147483648
    %v2133 = vmul.f32 %v2132, 1.442695
    %v2134 = vpow.pop %v2133
    %v2135 = vadd.f32 %v2134, 1.0
    %v2136 = vrcp.pop %v2135
    %v2137 = vmul.f32 1.0, %v2136
    %2138 = vmatprep.subr.mxu0 0.0
    %2139 = vmatpush1.msra.mxu0 0.0
    %2140 = vmatprep.subr.mxu0 0.0
    %2141 = vmatpush1.msra.mxu0 0.0
    %2142 = vmatprep.subr.mxu0 0.0
    %2143 = vmatpush1.msra.mxu0 0.0
    %2144 = vmatprep.subr.mxu0 0.0
    %2145 = vmatpush1.msra.mxu0 0.0
    %2146 = vmatprep.subr.mxu0 0.0
    %2147 = vmatpush1.msra.mxu0 0.0
    %2148 = vmatprep.subr.mxu0 0.0
    %2149 = vmatpush1.msra.mxu0 0.0
    %2150 = vmatprep.subr.mxu0 0.0
    %2151 = vmatpush1.msra.mxu0 0.0
    %2152 = vmatprep.subr.mxu0 0.0
    %2153 = vmatpush1.msra.mxu0 0.0
    %2154 = vmatprep.subr.mxu0 0.0
    %2155 = vmatpush1.msra.mxu0 0.0
    %2156 = vmatprep.subr.mxu0 0.0
    %2157 = vmatpush1.msra.mxu0 0.0
    %2158 = vmatprep.subr.mxu0 0.0
    %2159 = vmatpush1.msra.mxu0 0.0
    %2160 = vmatprep.subr.mxu0 0.0
    %2161 = vmatpush1.msra.mxu0 0.0
    %2162 = vmatprep.subr.mxu0 0.0
    %2163 = vmatpush1.msra.mxu0 %v338
    %2164 = vmatprep.subr.mxu0 0.0
    %2165 = vmatpush1.msra.mxu0 %v337
    %2166 = vmatprep.subr.mxu0 0.0
    %2167 = vmatpush1.msra.mxu0 %v336
    %2168 = vmatprep.subr.mxu0 0.0
    %2169 = vmatpush1.msra.mxu0 %v335
    %2170 = vmatprep.subr.mxu0 0.0
    %2171 = vmatpush2.msra.mxu0 0.0
    %2172 = vmatprep.subr.mxu0 0.0
    %2173 = vmatpush2.msra.mxu0 0.0
    %2174 = vmatprep.subr.mxu0 0.0
    %2175 = vmatpush2.msra.mxu0 0.0
    %2176 = vmatprep.subr.mxu0 0.0
    %2177 = vmatpush2.msra.mxu0 0.0
    %2178 = vmatprep.subr.mxu0 0.0
    %2179 = vmatpush2.msra.mxu0 0.0
    %2180 = vmatprep.subr.mxu0 0.0
    %2181 = vmatpush2.msra.mxu0 0.0
    %2182 = vmatprep.subr.mxu0 0.0
    %2183 = vmatpush2.msra.mxu0 0.0
    %2184 = vmatprep.subr.mxu0 0.0
    %2185 = vmatpush2.msra.mxu0 0.0
    %2186 = vmatprep.subr.mxu0 0.0
    %2187 = vmatpush2.msra.mxu0 0.0
    %2188 = vmatprep.subr.mxu0 0.0
    %2189 = vmatpush2.msra.mxu0 0.0
    %2190 = vmatprep.subr.mxu0 0.0
    %2191 = vmatpush2.msra.mxu0 0.0
    %2192 = vmatprep.subr.mxu0 0.0
    %2193 = vmatpush2.msra.mxu0 0.0
    %2194 = vmatprep.subr.mxu0 0.0
    %2195 = vmatpush2.msra.mxu0 0.0
    %2196 = vmatprep.subr.mxu0 0.0
    %2197 = vmatpush2.msra.mxu0 0.0
    %2198 = vmatprep.subr.mxu0 0.0
    %2199 = vmatpush2.msra.mxu0 0.0
    %2200 = vmatprep.subr.mxu0 0.0
    %2201 = vmatpush2.msra.mxu0 0.0
    %2202 = vmatprep.mubr.f32.mxu0 0.0
    %2203 = vmatmul.mubr.f32.gmra.mxu0 %v2058
    %v2204 = vpop.f32.mrf.mxu0
    %v2205 = vadd.f32 0.0, %v2204
    %v2206 = vpop.f32.mrf.mxu0
    %2207 = vdwg.mxu0
    %v2208 = vadd.f32 %v2055, %v2205
    %v2209 = vadd.f32 %v2208, %v514
    %v2210 = vxor.u32 %v2209, 2147483648
    %v2211 = vmul.f32 %v2210, 1.442695
    %v2212 = vpow.pop %v2211
    %v2213 = vadd.f32 %v2212, 1.0
    %v2214 = vrcp.pop %v2213
    %v2215 = vmul.f32 1.0, %v2214
    %2216 = vmatprep.subr.mxu0 0.0
    %2217 = vmatpush1.msra.mxu0 0.0
    %2218 = vmatprep.subr.mxu0 0.0
    %2219 = vmatpush1.msra.mxu0 0.0
    %2220 = vmatprep.subr.mxu0 0.0
    %2221 = vmatpush1.msra.mxu0 0.0
    %2222 = vmatprep.subr.mxu0 0.0
    %2223 = vmatpush1.msra.mxu0 0.0
    %2224 = vmatprep.subr.mxu0 0.0
    %2225 = vmatpush1.msra.mxu0 0.0
    %2226 = vmatprep.subr.mxu0 0.0
    %2227 = vmatpush1.msra.mxu0 0.0
    %2228 = vmatprep.subr.mxu0 0.0
    %2229 = vmatpush1.msra.mxu0 0.0
    %2230 = vmatprep.subr.mxu0 0.0
    %2231 = vmatpush1.msra.mxu0 0.0
    %2232 = vmatprep.subr.mxu0 0.0
    %2233 = vmatpush1.msra.mxu0 0.0
    %2234 = vmatprep.subr.mxu0 0.0
    %2235 = vmatpush1.msra.mxu0 0.0
    %2236 = vmatprep.subr.mxu0 0.0
    %2237 = vmatpush1.msra.mxu0 0.0
    %2238 = vmatprep.subr.mxu0 0.0
    %2239 = vmatpush1.msra.mxu0 0.0
    %2240 = vmatprep.subr.mxu0 0.0
    %2241 = vmatpush1.msra.mxu0 %v343
    %2242 = vmatprep.subr.mxu0 0.0
    %2243 = vmatpush1.msra.mxu0 %v342
    %2244 = vmatprep.subr.mxu0 0.0
    %2245 = vmatpush1.msra.mxu0 %v341
    %2246 = vmatprep.subr.mxu0 0.0
    %2247 = vmatpush1.msra.mxu0 %v340
    %2248 = vmatprep.subr.mxu0 0.0
    %2249 = vmatpush2.msra.mxu0 0.0
    %2250 = vmatprep.subr.mxu0 0.0
    %2251 = vmatpush2.msra.mxu0 0.0
    %2252 = vmatprep.subr.mxu0 0.0
    %2253 = vmatpush2.msra.mxu0 0.0
    %2254 = vmatprep.subr.mxu0 0.0
    %2255 = vmatpush2.msra.mxu0 0.0
    %2256 = vmatprep.subr.mxu0 0.0
    %2257 = vmatpush2.msra.mxu0 0.0
    %2258 = vmatprep.subr.mxu0 0.0
    %2259 = vmatpush2.msra.mxu0 0.0
    %2260 = vmatprep.subr.mxu0 0.0
    %2261 = vmatpush2.msra.mxu0 0.0
    %2262 = vmatprep.subr.mxu0 0.0
    %2263 = vmatpush2.msra.mxu0 0.0
    %2264 = vmatprep.subr.mxu0 0.0
    %2265 = vmatpush2.msra.mxu0 0.0
    %2266 = vmatprep.subr.mxu0 0.0
    %2267 = vmatpush2.msra.mxu0 0.0
    %2268 = vmatprep.subr.mxu0 0.0
    %2269 = vmatpush2.msra.mxu0 0.0
    %2270 = vmatprep.subr.mxu0 0.0
    %2271 = vmatpush2.msra.mxu0 0.0
    %2272 = vmatprep.subr.mxu0 0.0
    %2273 = vmatpush2.msra.mxu0 0.0
    %2274 = vmatprep.subr.mxu0 0.0
    %2275 = vmatpush2.msra.mxu0 0.0
    %2276 = vmatprep.subr.mxu0 0.0
    %2277 = vmatpush2.msra.mxu0 0.0
    %2278 = vmatprep.subr.mxu0 0.0
    %2279 = vmatpush2.msra.mxu0 0.0
    %2280 = vmatprep.mubr.f32.mxu0 0.0
    %2281 = vmatmul.mubr.f32.gmra.mxu0 %v2058
    %v2282 = vpop.f32.mrf.mxu0
    %v2283 = vadd.f32 %v527, %v2282
    %v2284 = vpop.f32.mrf.mxu0
    %2285 = vdwg.mxu0
    %v2286 = vmul.f32 %v2137, %v2283
    %v2287 = vadd.f32 %v2056, %v2286
    %v2288 = vtanh.pop %v2287
    %v2289 = vsub.f32 1.0, %v2215
    %v2290 = vmul.f32 %v2289, %v2288
    %v2291 = vmul.f32 %v2215, %v2051
    %v2292 = vadd.f32 %v2290, %v2291
    %s2293 = scalar_lea.vmem [#allocation6], 14
    %2294 = vst.msk [vmem:[%s2293] sm:$0x3] %vm606, %v2292
    // Predicated region
    $region34: #{tpu_custom_call.1} parent=1 // pred_check
      _
    $region35: #{tpu_custom_call.1} parent=1 // pred_check_branch
      %2296 = sbr.rel (0) target = $region37
    $region36: #{tpu_custom_call.1} parent=1 // pred_region
      %s2298 = ssub.s32 256, 256
      %2299 = vsyncadd [#allocation5], %s2298
      %s2300 = sshll.u32 [#allocation6], 4
      %s2301 = int_to_ptr.vmem [resolvable:$true] %s2300
      %2306 = dma.vmem_to_hbm [thread:$0]  %s2301, 256, %s7, [#allocation5], 32, 32, 2
    $region37: #{tpu_custom_call.1} parent=1 // pred_fallthru
      _
    // Predicated region
    $region38: #{tpu_custom_call.1} parent=1 // pred_check
      _
    $region39: #{tpu_custom_call.1} parent=1 // pred_check_branch
      %2308 = sbr.rel (0) target = $region41
    $region40: #{tpu_custom_call.1} parent=1 // pred_region
      %2309 = dma.done [#allocation5], 256
    $region41: #{tpu_custom_call.1} parent=1 // pred_fallthru
      _
    %2310 = vsyncpa [#allocation4], 1
    %2311 = vsyncpa [#allocation5], 1

</llo_original>
